<compile_context>
chip_gen: v6e
topology: v6e:2x2x1
jax: 0.10.0
libtpu: 0.0.40
codegen_flags: <defaults>
</compile_context>

<pallas_src>
import functools

import jax
import jax.numpy as jnp
from jax.experimental import pallas as pl
from jax.experimental.pallas import tpu as pltpu


# ---------------------------------------------------------------------------
# Pallas kernel: fused 3x3 stride-2 conv + folded BN + ReLU (one image / step)
# ---------------------------------------------------------------------------
def _conv3x3_s2_bn_relu_kernel(x_ref, w_ref, s_ref, b_ref, o_ref, *, ho, wo, cin):
    # x_ref: (4, Ho+1, Wo+1, Cin)  bf16  -- stride-2 phase split (hp*2 + wp)
    # w_ref: (9*Cin, Cout)         bf16  -- rows ordered (kh, kw, cin)
    # s_ref, b_ref: (1, Cout)      f32   -- folded BN scale / bias
    # o_ref: (Ho*Wo, Cout)         f32   -- spatially flattened output
    patches = []
    for kh in range(3):                       # static unroll over the 9 taps
        for kw in range(3):
            p = (kh % 2) * 2 + (kw % 2)       # parity plane
            dh, dw = kh // 2, kw // 2         # offset inside the plane
            t = x_ref[p, dh:dh + ho, dw:dw + wo, :]       # (Ho, Wo, Cin)
            patches.append(t.reshape(ho * wo, cin))       # (Ho*Wo, Cin)
    lhs = jnp.concatenate(patches, axis=-1)               # (Ho*Wo, 9*Cin) bf16

    acc = jnp.dot(lhs, w_ref[...],                        # single deep-K MXU matmul
                  preferred_element_type=jnp.float32)     # (Ho*Wo, Cout) f32
    y = jnp.maximum(acc * s_ref[...] + b_ref[...], 0.0)   # BN + ReLU fused (f32)
    o_ref[...] = y


# ---------------------------------------------------------------------------
# Host-side glue: stride-2 space-to-depth phase split (pure layout, plain JAX)
# ---------------------------------------------------------------------------
def _phase_split(x, ho, wo):
    """x: (N, H, W, C) -> (N, 4, ho+1, wo+1, C); plane p = (row%2)*2 + col%2."""
    n, _, _, c = x.shape
    x = x[:, :2 * ho + 1, :2 * wo + 1, :]                 # crop to used receptive field
    x = jnp.pad(x, ((0, 0), (0, 1), (0, 1), (0, 0)))      # pad to even extents (zeros never read)
    x = x.reshape(n, ho + 1, 2, wo + 1, 2, c)
    x = jnp.transpose(x, (0, 2, 4, 1, 3, 5))              # (N, hp, wp, ho+1, wo+1, C)
    return x.reshape(n, 4, ho + 1, wo + 1, c)


# ---------------------------------------------------------------------------
# Conv3x3Branch forward (Pallas)
# ---------------------------------------------------------------------------
def conv3x3_branch(x_nchw, params):
    """Conv3x3Branch: 3x3 conv (stride=2, padding=0, no bias) -> BN -> ReLU."""
    x = jnp.transpose(x_nchw, (0, 2, 3, 1)).astype(jnp.float32)   # NCHW -> NHWC
    n, h, w_dim, cin = x.shape
    w = params["w"]                                               # (3, 3, Cin, Cout)
    kh_size, kw_size, _, cout = w.shape
    ho = (h - kh_size) // 2 + 1
    wo = (w_dim - kw_size) // 2 + 1

    x_ph = _phase_split(x, ho, wo).astype(jnp.bfloat16)           # (N,4,Ho+1,Wo+1,Cin)
    w2d = w.reshape(kh_size * kw_size * cin, cout).astype(jnp.bfloat16)
    scale = params["scale"].reshape(1, cout).astype(jnp.float32)
    bias = params["bias"].reshape(1, cout).astype(jnp.float32)

    kernel = functools.partial(_conv3x3_s2_bn_relu_kernel, ho=ho, wo=wo, cin=cin)

    # NOTE: at large H/W/N this whole-image-per-step tiling should be extended
    # with a spatial grid axis (grid=(N, Ho//tile)); unnecessary at these sizes.
    out = pl.pallas_call(
        kernel,
        out_shape=jax.ShapeDtypeStruct((n, ho * wo, cout), jnp.float32),
        grid=(n,),
        in_specs=[
            pl.BlockSpec((None, 4, ho + 1, wo + 1, cin), lambda i: (i, 0, 0, 0, 0)),
            pl.BlockSpec((kh_size * kw_size * cin, cout), lambda i: (0, 0)),
            pl.BlockSpec((1, cout), lambda i: (0, 0)),
            pl.BlockSpec((1, cout), lambda i: (0, 0)),
        ],
        out_specs=pl.BlockSpec((None, ho * wo, cout), lambda i: (i, 0, 0)),
        compiler_params=pltpu.CompilerParams(
            dimension_semantics=("parallel",)),        # batch images are independent
    )(x_ph, w2d, scale, bias)

    out = out.reshape(n, ho, wo, cout)
    return jnp.transpose(out, (0, 3, 1, 2))                       # back to NCHW


# ---------------------------------------------------------------------------
# Deterministic parameter construction (Conv weight + folded BatchNorm)
# ---------------------------------------------------------------------------
def make_incept_conv_params(key, cin, cout, kh, kw):
    k1, k2, k3, k4, k5 = jax.random.split(key, 5)
    fan_in = kh * kw * cin
    w = jax.random.normal(k1, (kh, kw, cin, cout), jnp.float32) / jnp.sqrt(
        jnp.float32(fan_in))
    gamma = jax.random.uniform(k2, (cout,), jnp.float32, 0.5, 1.5)
    beta = jax.random.normal(k3, (cout,), jnp.float32) * 0.1
    rmean = jax.random.normal(k4, (cout,), jnp.float32) * 0.1
    rvar = jax.random.uniform(k5, (cout,), jnp.float32, 0.5, 1.5)
    eps = 1e-3  # BatchNorm2d(eps=0.001)
    scale = gamma / jnp.sqrt(rvar + eps)
    bias = beta - rmean * scale
    return dict(w=w, scale=scale, bias=bias)


# ---------------------------------------------------------------------------
# Pure-JAX f32 reference (correctness sanity check)
# ---------------------------------------------------------------------------
def conv3x3_branch_ref(x_nchw, params):
    x = jnp.transpose(x_nchw, (0, 2, 3, 1)).astype(jnp.float32)
    y = jax.lax.conv_general_dilated(
        x, params["w"], window_strides=(2, 2), padding="VALID",
        dimension_numbers=("NHWC", "HWIO", "NHWC"))
    y = jnp.maximum(y * params["scale"] + params["bias"], 0.0)
    return jnp.transpose(y, (0, 3, 1, 2))


if __name__ == "__main__":
    key = jax.random.PRNGKey(0)
    k_x, k_p = jax.random.split(key)

    # Small shapes consistent with the module (lane-friendly channel counts).
    N, Cin, H, W = 2, 128, 17, 17
    Cout = 128
    x = jax.random.normal(k_x, (N, Cin, H, W), jnp.float32)       # NCHW
    params = make_incept_conv_params(k_p, Cin, Cout, 3, 3)

    out = jax.block_until_ready(conv3x3_branch(x, params))
    Ho = (H - 3) // 2 + 1
    Wo = (W - 3) // 2 + 1
    assert out.shape == (N, Cout, Ho, Wo), out.shape

    ref = jax.block_until_ready(conv3x3_branch_ref(x, params))
    # Kernel uses bf16 MXU inputs (f32 accumulation); tolerance widened vs the
    # all-f32 reference accordingly (K = 9*128 = 1152 accumulated products).
    err = float(jnp.max(jnp.abs(out - ref)))
    assert jnp.allclose(out, ref, rtol=5e-2, atol=5e-2), err

    print("KERNEL_OK")
</pallas_src>

<mosaic_0001>
module attributes {stable_mosaic.version = 11 : i64} {
  func.func @_conv3x3_s2_bn_relu_kernel(%arg0: i32, %arg1: memref<1x4x9x9x128xbf16, #tpu.memory_space<vmem>>, %arg2: memref<1152x128xbf16, #tpu.memory_space<vmem>>, %arg3: memref<1x128xf32, #tpu.memory_space<vmem>>, %arg4: memref<1x128xf32, #tpu.memory_space<vmem>>, %arg5: memref<1x64x128xf32, #tpu.memory_space<vmem>>) attributes {dimension_semantics = [#tpu.dimension_semantics<parallel>], iteration_bounds = array<i64: 2>, scalar_prefetch = 0 : i64, scratch_operands = 0 : i64, tpu.core_type = #tpu.core_type<tc>, window_params = [{transform_indices = @transform_0, window_bounds = array<i64: 1, 4, 9, 9, 128>}, {pipeline_mode = #tpu.pipeline_mode<synchronous>, transform_indices = @transform_1, window_bounds = array<i64: 1152, 128>}, {pipeline_mode = #tpu.pipeline_mode<synchronous>, transform_indices = @transform_2, window_bounds = array<i64: 1, 128>}, {pipeline_mode = #tpu.pipeline_mode<synchronous>, transform_indices = @transform_3, window_bounds = array<i64: 1, 128>}, {transform_indices = @transform_4, window_bounds = array<i64: 1, 64, 128>}]} {
    %c0 = arith.constant 0 : index
    %c0_0 = arith.constant 0 : index
    %c0_1 = arith.constant 0 : index
    %c0_2 = arith.constant 0 : index
    %c0_3 = arith.constant 0 : index
    %0 = vector.load %arg1[%c0, %c0_0, %c0_1, %c0_2, %c0_3] : memref<1x4x9x9x128xbf16, #tpu.memory_space<vmem>>, vector<1x1x8x8x128xbf16>
    %1 = vector.shape_cast %0 : vector<1x1x8x8x128xbf16> to vector<8x8x128xbf16>
    %2 = vector.shape_cast %1 : vector<8x8x128xbf16> to vector<64x128xbf16>
    %c0_4 = arith.constant 0 : index
    %c1 = arith.constant 1 : index
    %c0_5 = arith.constant 0 : index
    %c0_6 = arith.constant 0 : index
    %c0_7 = arith.constant 0 : index
    %3 = vector.load %arg1[%c0_4, %c1, %c0_5, %c0_6, %c0_7] : memref<1x4x9x9x128xbf16, #tpu.memory_space<vmem>>, vector<1x1x8x8x128xbf16>
    %4 = vector.shape_cast %3 : vector<1x1x8x8x128xbf16> to vector<8x8x128xbf16>
    %5 = vector.shape_cast %4 : vector<8x8x128xbf16> to vector<64x128xbf16>
    %c0_8 = arith.constant 0 : index
    %c0_9 = arith.constant 0 : index
    %c0_10 = arith.constant 0 : index
    %c1_11 = arith.constant 1 : index
    %c0_12 = arith.constant 0 : index
    %6 = vector.load %arg1[%c0_8, %c0_9, %c0_10, %c1_11, %c0_12] : memref<1x4x9x9x128xbf16, #tpu.memory_space<vmem>>, vector<1x1x8x8x128xbf16>
    %7 = vector.shape_cast %6 : vector<1x1x8x8x128xbf16> to vector<8x8x128xbf16>
    %8 = vector.shape_cast %7 : vector<8x8x128xbf16> to vector<64x128xbf16>
    %c0_13 = arith.constant 0 : index
    %c2 = arith.constant 2 : index
    %c0_14 = arith.constant 0 : index
    %c0_15 = arith.constant 0 : index
    %c0_16 = arith.constant 0 : index
    %9 = vector.load %arg1[%c0_13, %c2, %c0_14, %c0_15, %c0_16] : memref<1x4x9x9x128xbf16, #tpu.memory_space<vmem>>, vector<1x1x8x8x128xbf16>
    %10 = vector.shape_cast %9 : vector<1x1x8x8x128xbf16> to vector<8x8x128xbf16>
    %11 = vector.shape_cast %10 : vector<8x8x128xbf16> to vector<64x128xbf16>
    %c0_17 = arith.constant 0 : index
    %c3 = arith.constant 3 : index
    %c0_18 = arith.constant 0 : index
    %c0_19 = arith.constant 0 : index
    %c0_20 = arith.constant 0 : index
    %12 = vector.load %arg1[%c0_17, %c3, %c0_18, %c0_19, %c0_20] : memref<1x4x9x9x128xbf16, #tpu.memory_space<vmem>>, vector<1x1x8x8x128xbf16>
    %13 = vector.shape_cast %12 : vector<1x1x8x8x128xbf16> to vector<8x8x128xbf16>
    %14 = vector.shape_cast %13 : vector<8x8x128xbf16> to vector<64x128xbf16>
    %c0_21 = arith.constant 0 : index
    %c2_22 = arith.constant 2 : index
    %c0_23 = arith.constant 0 : index
    %c1_24 = arith.constant 1 : index
    %c0_25 = arith.constant 0 : index
    %15 = vector.load %arg1[%c0_21, %c2_22, %c0_23, %c1_24, %c0_25] : memref<1x4x9x9x128xbf16, #tpu.memory_space<vmem>>, vector<1x1x8x8x128xbf16>
    %16 = vector.shape_cast %15 : vector<1x1x8x8x128xbf16> to vector<8x8x128xbf16>
    %17 = vector.shape_cast %16 : vector<8x8x128xbf16> to vector<64x128xbf16>
    %c0_26 = arith.constant 0 : index
    %c0_27 = arith.constant 0 : index
    %c1_28 = arith.constant 1 : index
    %c0_29 = arith.constant 0 : index
    %c0_30 = arith.constant 0 : index
    %18 = vector.load %arg1[%c0_26, %c0_27, %c1_28, %c0_29, %c0_30] : memref<1x4x9x9x128xbf16, #tpu.memory_space<vmem>>, vector<1x1x8x8x128xbf16>
    %19 = vector.shape_cast %18 : vector<1x1x8x8x128xbf16> to vector<8x8x128xbf16>
    %20 = vector.shape_cast %19 : vector<8x8x128xbf16> to vector<64x128xbf16>
    %c0_31 = arith.constant 0 : index
    %c1_32 = arith.constant 1 : index
    %c1_33 = arith.constant 1 : index
    %c0_34 = arith.constant 0 : index
    %c0_35 = arith.constant 0 : index
    %21 = vector.load %arg1[%c0_31, %c1_32, %c1_33, %c0_34, %c0_35] : memref<1x4x9x9x128xbf16, #tpu.memory_space<vmem>>, vector<1x1x8x8x128xbf16>
    %22 = vector.shape_cast %21 : vector<1x1x8x8x128xbf16> to vector<8x8x128xbf16>
    %23 = vector.shape_cast %22 : vector<8x8x128xbf16> to vector<64x128xbf16>
    %c0_36 = arith.constant 0 : index
    %c0_37 = arith.constant 0 : index
    %c1_38 = arith.constant 1 : index
    %c1_39 = arith.constant 1 : index
    %c0_40 = arith.constant 0 : index
    %24 = vector.load %arg1[%c0_36, %c0_37, %c1_38, %c1_39, %c0_40] : memref<1x4x9x9x128xbf16, #tpu.memory_space<vmem>>, vector<1x1x8x8x128xbf16>
    %25 = vector.shape_cast %24 : vector<1x1x8x8x128xbf16> to vector<8x8x128xbf16>
    %26 = vector.shape_cast %25 : vector<8x8x128xbf16> to vector<64x128xbf16>
    %27 = tpu.concatenate %2, %5, %8, %11, %14, %17, %20, %23, %26 in 1 : vector<64x128xbf16>, vector<64x128xbf16>, vector<64x128xbf16>, vector<64x128xbf16>, vector<64x128xbf16>, vector<64x128xbf16>, vector<64x128xbf16>, vector<64x128xbf16>, vector<64x128xbf16> -> vector<64x1152xbf16>
    %c0_41 = arith.constant 0 : index
    %c0_42 = arith.constant 0 : index
    %28 = vector.load %arg2[%c0_41, %c0_42] : memref<1152x128xbf16, #tpu.memory_space<vmem>>, vector<1152x128xbf16>
    %cst = arith.constant dense<0.000000e+00> : vector<64x128xf32>
    %29 = tpu.matmul %27, %28, %cst {dimension_numbers = #tpu.dot_dimension_numbers<[1], [0], [0], [1], [0, 0, 1, 1], [], []>} : vector<64x1152xbf16>, vector<1152x128xbf16>, vector<64x128xf32> -> vector<64x128xf32>
    %c0_43 = arith.constant 0 : index
    %c0_44 = arith.constant 0 : index
    %30 = vector.load %arg3[%c0_43, %c0_44] : memref<1x128xf32, #tpu.memory_space<vmem>>, vector<1x128xf32>
    %31 = vector.broadcast %30 : vector<1x128xf32> to vector<64x128xf32>
    %32 = arith.mulf %29, %31 : vector<64x128xf32>
    %c0_45 = arith.constant 0 : index
    %c0_46 = arith.constant 0 : index
    %33 = vector.load %arg4[%c0_45, %c0_46] : memref<1x128xf32, #tpu.memory_space<vmem>>, vector<1x128xf32>
    %34 = vector.broadcast %33 : vector<1x128xf32> to vector<64x128xf32>
    %35 = arith.addf %32, %34 : vector<64x128xf32>
    %cst_47 = arith.constant 0.000000e+00 : f32
    %36 = vector.broadcast %cst_47 : f32 to vector<64x128xf32>
    %37 = arith.maximumf %35, %36 : vector<64x128xf32>
    %c0_48 = arith.constant 0 : index
    %c0_49 = arith.constant 0 : index
    %c0_50 = arith.constant 0 : index
    %38 = vector.load %arg5[%c0_48, %c0_49, %c0_50] : memref<1x64x128xf32, #tpu.memory_space<vmem>>, vector<1x64x128xf32>
    %39 = vector.shape_cast %38 : vector<1x64x128xf32> to vector<64x128xf32>
    %40 = vector.shape_cast %37 : vector<64x128xf32> to vector<1x64x128xf32>
    tpu.vector_store %arg5[%c0_48, %c0_49, %c0_50], %40 {strides = array<i32>} : memref<1x64x128xf32, #tpu.memory_space<vmem>>, vector<1x64x128xf32>,
    return
  }
  func.func @transform_0(%arg0: i32) -> (i32, i32, i32, i32, i32) {
    %c0_i32 = arith.constant 0 : i32
    %c0_i32_0 = arith.constant 0 : i32
    %c0_i32_1 = arith.constant 0 : i32
    %c0_i32_2 = arith.constant 0 : i32
    %c0_i32_3 = arith.constant 0 : i32
    return %arg0, %c0_i32, %c0_i32_0, %c0_i32_1, %c0_i32_2 : i32, i32, i32, i32, i32
  }
  func.func @transform_1(%arg0: i32) -> (i32, i32) {
    %c0_i32 = arith.constant 0 : i32
    %c0_i32_0 = arith.constant 0 : i32
    %c0_i32_1 = arith.constant 0 : i32
    return %c0_i32, %c0_i32_0 : i32, i32
  }
  func.func @transform_2(%arg0: i32) -> (i32, i32) {
    %c0_i32 = arith.constant 0 : i32
    %c0_i32_0 = arith.constant 0 : i32
    %c0_i32_1 = arith.constant 0 : i32
    return %c0_i32, %c0_i32_0 : i32, i32
  }
  func.func @transform_3(%arg0: i32) -> (i32, i32) {
    %c0_i32 = arith.constant 0 : i32
    %c0_i32_0 = arith.constant 0 : i32
    %c0_i32_1 = arith.constant 0 : i32
    return %c0_i32, %c0_i32_0 : i32, i32
  }
  func.func @transform_4(%arg0: i32) -> (i32, i32, i32) {
    %c0_i32 = arith.constant 0 : i32
    %c0_i32_0 = arith.constant 0 : i32
    %c0_i32_1 = arith.constant 0 : i32
    return %arg0, %c0_i32, %c0_i32_0 : i32, i32, i32
  }
}

</mosaic_0001>

<llo_original>
// kernel: tpu_custom_call.1
$region0: #{tpu_custom_call.1}
  #allocation0 [shape = 'u32[]', space=smem, size = 0x4, offset = 0x4, fixed_abs, tag = 'smem constant byte address 0x4 - core index']
  #allocation1 [shape = 'u32[144,128]{1,0:T(1,128)}', space=vmem, size = 0x12000, scoped, tag = 'internal scratch']
  %s0 = inlined_call_operand.vmem [shape: bf16[2,4,9,9,128], index: 0, kind: input, shape index: {}]
  %s1 = inlined_call_operand.vmem [shape: bf16[1152,128], index: 1, kind: input, shape index: {}]
  %s2 = inlined_call_operand.vmem [shape: f32[1,128], index: 2, kind: input, shape index: {}]
  %s3 = inlined_call_operand.vmem [shape: f32[1,128], index: 3, kind: input, shape index: {}]
  %s4 = inlined_call_operand.hbm [shape: f32[2,64,128], index: 4, kind: output, shape index: {}]
  %s5 = sld [smem:[#allocation0]]
  $region49: #{tpu_custom_call.1} parent=0
    _
  %s7 = ssub.s32 1, %s5
  %s8 = scalar_select 0, %s7, %s5
  $region1: #{tpu_custom_call.1} parent=0
    #allocation2 [shape = 'u8[65536]{0}', space=vmem, size = 0x10000, scoped, tag = 'output window, operand 0']
    #allocation3 [shape = 's32[2]{0}', space=sflag, size = 0x8, scoped, tag = 'scoped memory for tpu_custom_call.1']
    %9 = vsyncpa [#allocation3], 0
    %s10 = scalar_lea.sflag [#allocation3], 1
    %11 = vsyncpa %s10, 0
    loop: start=0, step=1, limit=4
    $region2: #{tpu_custom_call.1} parent=1 // loop_pre_header
      _
    $region3: #{tpu_custom_call.1} parent=1 // loop_header
      %s13 = sphi 0, %s17
      %p14 = scmp.ge.s32.totalorder %s13, 4
      %s23 = sphi 0, %s25
      %s26 = sphi 0, %s23
      %s27 = sphi 0, %s26
      %s43 = sphi 0, %s27
      %s47 = sphi 0, %s47
      %s49 = sphi 0, %s47
      %s50 = sphi 0, %s49
      %s64 = sphi 0, %s50
      %s68 = sphi 0, %s68
      %s70 = sphi 0, %s68
      %s71 = sphi 0, %s70
      %s85 = sphi 0, %s71
      %s89 = sphi 0, %s89
      %s91 = sphi 0, %s89
      %s92 = sphi 0, %s91
      %s106 = sphi 0, %s92
      %s112 = sphi 0, %s114
      %s115 = sphi 0, %s112
      %s116 = sphi 0, %s115
      %s132 = sphi 0, %s116
    $region4: #{tpu_custom_call.1} parent=1 // loop_header_branch
      %16 = sbr.rel (%p14) target = $region8
    $region5: #{tpu_custom_call.1} parent=1 // loop_body
      %s18 = ssub.s32 %s13, 1
      %s19 = ssub.s32 %s13, 2
      %s20 = sadd.s32 %s13, 1
      %s21 = ssub.s32 %s13, %s20
      %p22 = scmp.eq.s32.totalorder %s21, 0
      %s24 = sadd.s32 %s23, 1
      %s25 = scalar_select %p22, %s23, %s24
      %p28 = pneg %p22
      %p29 = scmp.eq.s32.totalorder %s13, 1
      %p30 = por %p28, %p29
      %p31 = scmp.ne.s32.totalorder %s23, %s26
      %p32 = scmp.eq.s32.totalorder %s13, 0
      %p33 = por %p31, %p32
      %p34 = scmp.ne.s32.totalorder %s23, %s26
      %p35 = scmp.eq.s32.totalorder %s18, 1
      %p36 = por %p34, %p35
      %p37 = scmp.ne.s32.totalorder %s26, %s27
      %p38 = scmp.eq.s32.totalorder %s18, 0
      %p39 = por %p37, %p38
      %p40 = scmp.ne.s32.totalorder %s26, %s27
      %p41 = scmp.eq.s32.totalorder %s19, 1
      %p42 = por %p40, %p41
      %p44 = scmp.ne.s32.totalorder %s27, %s43
      %p45 = scmp.eq.s32.totalorder %s19, 0
      %p46 = por %p44, %p45
      %s48 = sadd.s32 %s47, 1
      %p51 = scmp.eq.s32.totalorder %s13, 1
      %p52 = scmp.ne.s32.totalorder %s47, %s49
      %p53 = scmp.eq.s32.totalorder %s13, 0
      %p54 = por %p52, %p53
      %p55 = scmp.ne.s32.totalorder %s47, %s49
      %p56 = scmp.eq.s32.totalorder %s18, 1
      %p57 = por %p55, %p56
      %p58 = scmp.ne.s32.totalorder %s49, %s50
      %p59 = scmp.eq.s32.totalorder %s18, 0
      %p60 = por %p58, %p59
      %p61 = scmp.ne.s32.totalorder %s49, %s50
      %p62 = scmp.eq.s32.totalorder %s19, 1
      %p63 = por %p61, %p62
      %p65 = scmp.ne.s32.totalorder %s50, %s64
      %p66 = scmp.eq.s32.totalorder %s19, 0
      %p67 = por %p65, %p66
      %s69 = sadd.s32 %s68, 1
      %p72 = scmp.eq.s32.totalorder %s13, 1
      %p73 = scmp.ne.s32.totalorder %s68, %s70
      %p74 = scmp.eq.s32.totalorder %s13, 0
      %p75 = por %p73, %p74
      %p76 = scmp.ne.s32.totalorder %s68, %s70
      %p77 = scmp.eq.s32.totalorder %s18, 1
      %p78 = por %p76, %p77
      %p79 = scmp.ne.s32.totalorder %s70, %s71
      %p80 = scmp.eq.s32.totalorder %s18, 0
      %p81 = por %p79, %p80
      %p82 = scmp.ne.s32.totalorder %s70, %s71
      %p83 = scmp.eq.s32.totalorder %s19, 1
      %p84 = por %p82, %p83
      %p86 = scmp.ne.s32.totalorder %s71, %s85
      %p87 = scmp.eq.s32.totalorder %s19, 0
      %p88 = por %p86, %p87
      %s90 = sadd.s32 %s89, 1
      %p93 = scmp.eq.s32.totalorder %s13, 1
      %p94 = scmp.ne.s32.totalorder %s89, %s91
      %p95 = scmp.eq.s32.totalorder %s13, 0
      %p96 = por %p94, %p95
      %p97 = scmp.ne.s32.totalorder %s89, %s91
      %p98 = scmp.eq.s32.totalorder %s18, 1
      %p99 = por %p97, %p98
      %p100 = scmp.ne.s32.totalorder %s91, %s92
      %p101 = scmp.eq.s32.totalorder %s18, 0
      %p102 = por %p100, %p101
      %p103 = scmp.ne.s32.totalorder %s91, %s92
      %p104 = scmp.eq.s32.totalorder %s19, 1
      %p105 = por %p103, %p104
      %p107 = scmp.ne.s32.totalorder %s92, %s106
      %p108 = scmp.eq.s32.totalorder %s19, 0
      %p109 = por %p107, %p108
      %s110 = ssub.s32 %s13, %s20
      %p111 = scmp.eq.s32.totalorder %s110, 0
      %s113 = sadd.s32 %s112, 1
      %s114 = scalar_select %p111, %s112, %s113
      %p117 = pneg %p111
      %p118 = scmp.eq.s32.totalorder %s13, 1
      %p119 = por %p117, %p118
      %p120 = scmp.ne.s32.totalorder %s112, %s115
      %p121 = scmp.eq.s32.totalorder %s13, 0
      %p122 = por %p120, %p121
      %p123 = scmp.ne.s32.totalorder %s112, %s115
      %p124 = scmp.eq.s32.totalorder %s18, 1
      %p125 = por %p123, %p124
      %p126 = scmp.ne.s32.totalorder %s115, %s116
      %p127 = scmp.eq.s32.totalorder %s18, 0
      %p128 = por %p126, %p127
      %p129 = scmp.ne.s32.totalorder %s115, %s116
      %p130 = scmp.eq.s32.totalorder %s19, 1
      %p131 = por %p129, %p130
      %p133 = scmp.ne.s32.totalorder %s116, %s132
      %p134 = scmp.eq.s32.totalorder %s19, 0
      %p135 = por %p133, %p134
      %p136 = scmp.le.s32.totalorder 1, %s13
      %p137 = scmp.lt.s32.totalorder %s13, 3
      %p138 = pnand %p136, %p137
      %p139 = pneg %p138
      // Predicated region
      $region9: #{tpu_custom_call.1} parent=5 // pred_check
        _
      $region10: #{tpu_custom_call.1} parent=5 // pred_check_branch
        %141 = sbr.rel (%p138) target = $region12
      $region11: #{tpu_custom_call.1} parent=5 // pred_region
        %s142 = ssub.s32 %s13, 1
        // Predicated region
        $region13: #{tpu_custom_call.1} parent=11 // pred_check
          %p143 = pneg %p60
        $region14: #{tpu_custom_call.1} parent=11 // pred_check_branch
          %145 = sbr.rel (%p143) target = $region16
        $region15: #{tpu_custom_call.1} parent=11 // pred_region
          _
        $region16: #{tpu_custom_call.1} parent=11 // pred_fallthru
          _
        // Predicated region
        $region17: #{tpu_custom_call.1} parent=11 // pred_check
          %p146 = pneg %p81
        $region18: #{tpu_custom_call.1} parent=11 // pred_check_branch
          %148 = sbr.rel (%p146) target = $region20
        $region19: #{tpu_custom_call.1} parent=11 // pred_region
          _
        $region20: #{tpu_custom_call.1} parent=11 // pred_fallthru
          _
        // Predicated region
        $region21: #{tpu_custom_call.1} parent=11 // pred_check
          %p149 = pneg %p102
        $region22: #{tpu_custom_call.1} parent=11 // pred_check_branch
          %151 = sbr.rel (%p149) target = $region24
        $region23: #{tpu_custom_call.1} parent=11 // pred_region
          _
        $region24: #{tpu_custom_call.1} parent=11 // pred_fallthru
          _
      $region12: #{tpu_custom_call.1} parent=5 // pred_fallthru
        _
      %p152 = scmp.lt.s32.totalorder %s13, 2
      // Predicated region
      $region25: #{tpu_custom_call.1} parent=5 // pred_check
        %p153 = pneg %p152
      $region26: #{tpu_custom_call.1} parent=5 // pred_check_branch
        %155 = sbr.rel (%p153) target = $region28
      $region27: #{tpu_custom_call.1} parent=5 // pred_region
        // Predicated region
        $region29: #{tpu_custom_call.1} parent=27 // pred_check
          %p156 = pneg %p33
        $region30: #{tpu_custom_call.1} parent=27 // pred_check_branch
          %158 = sbr.rel (%p156) target = $region32
        $region31: #{tpu_custom_call.1} parent=27 // pred_region
          %p159 = scmp.lt.s32.totalorder %s13, 1
          %s160 = scalar_select %p159, %s13, 1
          %s161 = smul.addr %s160, 72
          %s162 = smul.addr %s161, 4
          %s163 = scalar_lea.vmem %s0, %s162
        $region32: #{tpu_custom_call.1} parent=27 // pred_fallthru
          _
      $region28: #{tpu_custom_call.1} parent=5 // pred_fallthru
        _
      %p164 = scmp.le.s32.totalorder 1, %s13
      %p165 = scmp.lt.s32.totalorder %s13, 3
      %p166 = pnand %p164, %p165
      %p167 = pneg %p166
      // Predicated region
      $region33: #{tpu_custom_call.1} parent=5 // pred_check
        _
      $region34: #{tpu_custom_call.1} parent=5 // pred_check_branch
        %169 = sbr.rel (%p166) target = $region36
      $region35: #{tpu_custom_call.1} parent=5 // pred_region
        %s170 = ssub.s32 %s13, 1
        %p171 = scmp.lt.s32.totalorder %s18, 1
        %s172 = scalar_select %p171, %s18, 1
        %s173 = smul.addr %s172, 72
        %s174 = smul.addr %s173, 4
        %s175 = scalar_lea.vmem %s0, %s174
        %p176 = pneg %p39
        %p177 = pneg %p36
        %p178 = pneg %p60
        %p179 = pneg %p57
        %p180 = pneg %p81
        %p181 = pneg %p78
        %p182 = pneg %p102
        %p183 = pneg %p99
        %p184 = pneg %p128
        %p185 = pneg %p125
        %s186 = sand.u32 %s115, 1
        %s187 = scalar_lea.sflag [#allocation3], %s186
        %s188 = sand.u32 %s115, 1
        %s189 = smul.addr %s188, 64
        %s190 = scalar_lea.vmem [#allocation2], %s189
        %p191 = scmp.lt.s32.totalorder %s18, 1
        %s192 = scalar_select %p191, %s18, 1
        %s193 = smul.addr %s192, 72
        %s194 = smul.addr %s193, 4
        %s195 = scalar_lea.vmem %s0, %s194
        %v197 = vld [vmem:[%s195] sm:$0xf]
        %v198 = vld [vmem:[%s195 + $0x8] sm:$0xf]
        %v199 = vld [vmem:[%s195 + $0x10] sm:$0xf]
        %v200 = vld [vmem:[%s195 + $0x18] sm:$0xf]
        %v201 = vld [vmem:[%s195 + $0x20] sm:$0xf]
        %v202 = vld [vmem:[%s195 + $0x28] sm:$0xf]
        %v203 = vld [vmem:[%s195 + $0x30] sm:$0xf]
        %v204 = vld [vmem:[%s195 + $0x38] sm:$0xf]
        %s205 = scalar_lea.vmem %s195, 72
        %v206 = vld [vmem:[%s205] sm:$0xf]
        %v207 = vld [vmem:[%s205 + $0x8] sm:$0xf]
        %v208 = vld [vmem:[%s205 + $0x10] sm:$0xf]
        %v209 = vld [vmem:[%s205 + $0x18] sm:$0xf]
        %v210 = vld [vmem:[%s205 + $0x20] sm:$0xf]
        %v211 = vld [vmem:[%s205 + $0x28] sm:$0xf]
        %v212 = vld [vmem:[%s205 + $0x30] sm:$0xf]
        %v213 = vld [vmem:[%s205 + $0x38] sm:$0xf]
        %v214 = vld [vmem:[%s195 + $0x4] sm:$0x1]
        %v215 = vld [vmem:[%s195 + $0xc] sm:$0x1]
        %v216 = vld [vmem:[%s195 + $0x14] sm:$0x1]
        %v217 = vld [vmem:[%s195 + $0x1c] sm:$0x1]
        %v218 = vld [vmem:[%s195 + $0x24] sm:$0x1]
        %v219 = vld [vmem:[%s195 + $0x2c] sm:$0x1]
        %v220 = vld [vmem:[%s195 + $0x34] sm:$0x1]
        %v221 = vld [vmem:[%s195 + $0x3c] sm:$0x1]
        %vm222 = vsmask.f32 3328
        %vm223 = vsmask.f32 7440
        %vm224 = vmor %vm222, %vm223
        %v226 = vshrl.u32 %v197, 16
        %v228 = vrot.slane %v226, 4
        %v229 = vshll.u32 %v197, 16
        %v231 = vrot.slane %v229, 5
        %v232 = vor.u32 %v228, %v231
        %v233 = vrot.slane %v232, 4
        %v235 = vshll.u32 %v214, 16
        %v237 = vrot.slane %v235, 5
        %v238 = vsel %vm224, %v233, %v237
        %v240 = vshrl.u32 %v198, 16
        %v242 = vrot.slane %v240, 4
        %v243 = vshll.u32 %v198, 16
        %v245 = vrot.slane %v243, 5
        %v246 = vor.u32 %v242, %v245
        %v247 = vrot.slane %v246, 4
        %v249 = vshll.u32 %v215, 16
        %v251 = vrot.slane %v249, 5
        %v252 = vsel %vm224, %v247, %v251
        %v254 = vshrl.u32 %v199, 16
        %v256 = vrot.slane %v254, 4
        %v257 = vshll.u32 %v199, 16
        %v259 = vrot.slane %v257, 5
        %v260 = vor.u32 %v256, %v259
        %v261 = vrot.slane %v260, 4
        %v263 = vshll.u32 %v216, 16
        %v265 = vrot.slane %v263, 5
        %v266 = vsel %vm224, %v261, %v265
        %v268 = vshrl.u32 %v200, 16
        %v270 = vrot.slane %v268, 4
        %v271 = vshll.u32 %v200, 16
        %v273 = vrot.slane %v271, 5
        %v274 = vor.u32 %v270, %v273
        %v275 = vrot.slane %v274, 4
        %v277 = vshll.u32 %v217, 16
        %v279 = vrot.slane %v277, 5
        %v280 = vsel %vm224, %v275, %v279
        %v282 = vshrl.u32 %v201, 16
        %v284 = vrot.slane %v282, 4
        %v285 = vshll.u32 %v201, 16
        %v287 = vrot.slane %v285, 5
        %v288 = vor.u32 %v284, %v287
        %v289 = vrot.slane %v288, 4
        %v291 = vshll.u32 %v218, 16
        %v293 = vrot.slane %v291, 5
        %v294 = vsel %vm224, %v289, %v293
        %v296 = vshrl.u32 %v202, 16
        %v298 = vrot.slane %v296, 4
        %v299 = vshll.u32 %v202, 16
        %v301 = vrot.slane %v299, 5
        %v302 = vor.u32 %v298, %v301
        %v303 = vrot.slane %v302, 4
        %v305 = vshll.u32 %v219, 16
        %v307 = vrot.slane %v305, 5
        %v308 = vsel %vm224, %v303, %v307
        %v310 = vshrl.u32 %v203, 16
        %v312 = vrot.slane %v310, 4
        %v313 = vshll.u32 %v203, 16
        %v315 = vrot.slane %v313, 5
        %v316 = vor.u32 %v312, %v315
        %v317 = vrot.slane %v316, 4
        %v319 = vshll.u32 %v220, 16
        %v321 = vrot.slane %v319, 5
        %v322 = vsel %vm224, %v317, %v321
        %v324 = vshrl.u32 %v204, 16
        %v326 = vrot.slane %v324, 4
        %v327 = vshll.u32 %v204, 16
        %v329 = vrot.slane %v327, 5
        %v330 = vor.u32 %v326, %v329
        %v331 = vrot.slane %v330, 4
        %v333 = vshll.u32 %v221, 16
        %v335 = vrot.slane %v333, 5
        %v336 = vsel %vm224, %v331, %v335
        %s337 = scalar_lea.vmem %s195, 144
        %v338 = vld [vmem:[%s337] sm:$0xf]
        %v339 = vld [vmem:[%s337 + $0x8] sm:$0xf]
        %v340 = vld [vmem:[%s337 + $0x10] sm:$0xf]
        %v341 = vld [vmem:[%s337 + $0x18] sm:$0xf]
        %v342 = vld [vmem:[%s337 + $0x20] sm:$0xf]
        %v343 = vld [vmem:[%s337 + $0x28] sm:$0xf]
        %v344 = vld [vmem:[%s337 + $0x30] sm:$0xf]
        %v345 = vld [vmem:[%s337 + $0x38] sm:$0xf]
        %s346 = scalar_lea.vmem %s195, 216
        %v347 = vld [vmem:[%s346] sm:$0xf]
        %v348 = vld [vmem:[%s346 + $0x8] sm:$0xf]
        %v349 = vld [vmem:[%s346 + $0x10] sm:$0xf]
        %v350 = vld [vmem:[%s346 + $0x18] sm:$0xf]
        %v351 = vld [vmem:[%s346 + $0x20] sm:$0xf]
        %v352 = vld [vmem:[%s346 + $0x28] sm:$0xf]
        %v353 = vld [vmem:[%s346 + $0x30] sm:$0xf]
        %v354 = vld [vmem:[%s346 + $0x38] sm:$0xf]
        %v355 = vld [vmem:[%s337 + $0x4] sm:$0x1]
        %v356 = vld [vmem:[%s337 + $0xc] sm:$0x1]
        %v357 = vld [vmem:[%s337 + $0x14] sm:$0x1]
        %v358 = vld [vmem:[%s337 + $0x1c] sm:$0x1]
        %v359 = vld [vmem:[%s337 + $0x24] sm:$0x1]
        %v360 = vld [vmem:[%s337 + $0x2c] sm:$0x1]
        %v361 = vld [vmem:[%s337 + $0x34] sm:$0x1]
        %v362 = vld [vmem:[%s337 + $0x3c] sm:$0x1]
        %v364 = vshrl.u32 %v338, 16
        %v366 = vrot.slane %v364, 4
        %v367 = vshll.u32 %v338, 16
        %v369 = vrot.slane %v367, 5
        %v370 = vor.u32 %v366, %v369
        %v371 = vrot.slane %v370, 4
        %v373 = vshll.u32 %v355, 16
        %v375 = vrot.slane %v373, 5
        %v376 = vsel %vm224, %v371, %v375
        %v378 = vshrl.u32 %v339, 16
        %v380 = vrot.slane %v378, 4
        %v381 = vshll.u32 %v339, 16
        %v383 = vrot.slane %v381, 5
        %v384 = vor.u32 %v380, %v383
        %v385 = vrot.slane %v384, 4
        %v387 = vshll.u32 %v356, 16
        %v389 = vrot.slane %v387, 5
        %v390 = vsel %vm224, %v385, %v389
        %v392 = vshrl.u32 %v340, 16
        %v394 = vrot.slane %v392, 4
        %v395 = vshll.u32 %v340, 16
        %v397 = vrot.slane %v395, 5
        %v398 = vor.u32 %v394, %v397
        %v399 = vrot.slane %v398, 4
        %v401 = vshll.u32 %v357, 16
        %v403 = vrot.slane %v401, 5
        %v404 = vsel %vm224, %v399, %v403
        %v406 = vshrl.u32 %v341, 16
        %v408 = vrot.slane %v406, 4
        %v409 = vshll.u32 %v341, 16
        %v411 = vrot.slane %v409, 5
        %v412 = vor.u32 %v408, %v411
        %v413 = vrot.slane %v412, 4
        %v415 = vshll.u32 %v358, 16
        %v417 = vrot.slane %v415, 5
        %v418 = vsel %vm224, %v413, %v417
        %v420 = vshrl.u32 %v342, 16
        %v422 = vrot.slane %v420, 4
        %v423 = vshll.u32 %v342, 16
        %v425 = vrot.slane %v423, 5
        %v426 = vor.u32 %v422, %v425
        %v427 = vrot.slane %v426, 4
        %v429 = vshll.u32 %v359, 16
        %v431 = vrot.slane %v429, 5
        %v432 = vsel %vm224, %v427, %v431
        %v434 = vshrl.u32 %v343, 16
        %v436 = vrot.slane %v434, 4
        %v437 = vshll.u32 %v343, 16
        %v439 = vrot.slane %v437, 5
        %v440 = vor.u32 %v436, %v439
        %v441 = vrot.slane %v440, 4
        %v443 = vshll.u32 %v360, 16
        %v445 = vrot.slane %v443, 5
        %v446 = vsel %vm224, %v441, %v445
        %v448 = vshrl.u32 %v344, 16
        %v450 = vrot.slane %v448, 4
        %v451 = vshll.u32 %v344, 16
        %v453 = vrot.slane %v451, 5
        %v454 = vor.u32 %v450, %v453
        %v455 = vrot.slane %v454, 4
        %v457 = vshll.u32 %v361, 16
        %v459 = vrot.slane %v457, 5
        %v460 = vsel %vm224, %v455, %v459
        %v462 = vshrl.u32 %v345, 16
        %v464 = vrot.slane %v462, 4
        %v465 = vshll.u32 %v345, 16
        %v467 = vrot.slane %v465, 5
        %v468 = vor.u32 %v464, %v467
        %v469 = vrot.slane %v468, 4
        %v471 = vshll.u32 %v362, 16
        %v473 = vrot.slane %v471, 5
        %v474 = vsel %vm224, %v469, %v473
        %s475 = scalar_lea.vmem %s195, 8
        %v476 = vld [vmem:[%s475] sm:$0xf]
        %v477 = vld [vmem:[%s475 + $0x8] sm:$0xf]
        %v478 = vld [vmem:[%s475 + $0x10] sm:$0xf]
        %v479 = vld [vmem:[%s475 + $0x18] sm:$0xf]
        %v480 = vld [vmem:[%s475 + $0x20] sm:$0xf]
        %v481 = vld [vmem:[%s475 + $0x28] sm:$0xf]
        %v482 = vld [vmem:[%s475 + $0x30] sm:$0xf]
        %v483 = vld [vmem:[%s475 + $0x38] sm:$0xf]
        %s484 = scalar_lea.vmem %s195, 80
        %v485 = vld [vmem:[%s484] sm:$0xf]
        %v486 = vld [vmem:[%s484 + $0x8] sm:$0xf]
        %v487 = vld [vmem:[%s484 + $0x10] sm:$0xf]
        %v488 = vld [vmem:[%s484 + $0x18] sm:$0xf]
        %v489 = vld [vmem:[%s484 + $0x20] sm:$0xf]
        %v490 = vld [vmem:[%s484 + $0x28] sm:$0xf]
        %v491 = vld [vmem:[%s484 + $0x30] sm:$0xf]
        %v492 = vld [vmem:[%s484 + $0x38] sm:$0xf]
        %v493 = vld [vmem:[%s475 + $0x4] sm:$0x1]
        %v494 = vld [vmem:[%s475 + $0xc] sm:$0x1]
        %v495 = vld [vmem:[%s475 + $0x14] sm:$0x1]
        %v496 = vld [vmem:[%s475 + $0x1c] sm:$0x1]
        %v497 = vld [vmem:[%s475 + $0x24] sm:$0x1]
        %v498 = vld [vmem:[%s475 + $0x2c] sm:$0x1]
        %v499 = vld [vmem:[%s475 + $0x34] sm:$0x1]
        %v500 = vld [vmem:[%s475 + $0x3c] sm:$0x1]
        %v502 = vshrl.u32 %v476, 16
        %v504 = vrot.slane %v502, 4
        %v505 = vshll.u32 %v476, 16
        %v507 = vrot.slane %v505, 5
        %v508 = vor.u32 %v504, %v507
        %v509 = vrot.slane %v508, 4
        %v511 = vshll.u32 %v493, 16
        %v513 = vrot.slane %v511, 5
        %v514 = vsel %vm224, %v509, %v513
        %v516 = vshrl.u32 %v477, 16
        %v518 = vrot.slane %v516, 4
        %v519 = vshll.u32 %v477, 16
        %v521 = vrot.slane %v519, 5
        %v522 = vor.u32 %v518, %v521
        %v523 = vrot.slane %v522, 4
        %v525 = vshll.u32 %v494, 16
        %v527 = vrot.slane %v525, 5
        %v528 = vsel %vm224, %v523, %v527
        %v530 = vshrl.u32 %v478, 16
        %v532 = vrot.slane %v530, 4
        %v533 = vshll.u32 %v478, 16
        %v535 = vrot.slane %v533, 5
        %v536 = vor.u32 %v532, %v535
        %v537 = vrot.slane %v536, 4
        %v539 = vshll.u32 %v495, 16
        %v541 = vrot.slane %v539, 5
        %v542 = vsel %vm224, %v537, %v541
        %v544 = vshrl.u32 %v479, 16
        %v546 = vrot.slane %v544, 4
        %v547 = vshll.u32 %v479, 16
        %v549 = vrot.slane %v547, 5
        %v550 = vor.u32 %v546, %v549
        %v551 = vrot.slane %v550, 4
        %v553 = vshll.u32 %v496, 16
        %v555 = vrot.slane %v553, 5
        %v556 = vsel %vm224, %v551, %v555
        %v558 = vshrl.u32 %v480, 16
        %v560 = vrot.slane %v558, 4
        %v561 = vshll.u32 %v480, 16
        %v563 = vrot.slane %v561, 5
        %v564 = vor.u32 %v560, %v563
        %v565 = vrot.slane %v564, 4
        %v567 = vshll.u32 %v497, 16
        %v569 = vrot.slane %v567, 5
        %v570 = vsel %vm224, %v565, %v569
        %v572 = vshrl.u32 %v481, 16
        %v574 = vrot.slane %v572, 4
        %v575 = vshll.u32 %v481, 16
        %v577 = vrot.slane %v575, 5
        %v578 = vor.u32 %v574, %v577
        %v579 = vrot.slane %v578, 4
        %v581 = vshll.u32 %v498, 16
        %v583 = vrot.slane %v581, 5
        %v584 = vsel %vm224, %v579, %v583
        %v586 = vshrl.u32 %v482, 16
        %v588 = vrot.slane %v586, 4
        %v589 = vshll.u32 %v482, 16
        %v591 = vrot.slane %v589, 5
        %v592 = vor.u32 %v588, %v591
        %v593 = vrot.slane %v592, 4
        %v595 = vshll.u32 %v499, 16
        %v597 = vrot.slane %v595, 5
        %v598 = vsel %vm224, %v593, %v597
        %v600 = vshrl.u32 %v483, 16
        %v602 = vrot.slane %v600, 4
        %v603 = vshll.u32 %v483, 16
        %v605 = vrot.slane %v603, 5
        %v606 = vor.u32 %v602, %v605
        %v607 = vrot.slane %v606, 4
        %v609 = vshll.u32 %v500, 16
        %v611 = vrot.slane %v609, 5
        %v612 = vsel %vm224, %v607, %v611
        %v621 = vunpack.c.l.b16 %v197
        %v622 = vunpack.c.l.b16 %v198
        %v623 = vunpack.c.l.b16 %v199
        %v624 = vunpack.c.l.b16 %v200
        %v625 = vunpack.c.l.b16 %v201
        %v626 = vunpack.c.l.b16 %v202
        %v627 = vunpack.c.l.b16 %v203
        %v628 = vunpack.c.l.b16 %v204
        %v629 = vpack.c.b16 %v622, %v621
        %v630 = vpack.c.b16 %v624, %v623
        %v631 = vpack.c.b16 %v626, %v625
        %v632 = vpack.c.b16 %v628, %v627
        %v645 = vunpack.c.l.b16 %v206
        %v646 = vunpack.c.l.b16 %v207
        %v647 = vunpack.c.l.b16 %v208
        %v648 = vunpack.c.l.b16 %v209
        %v649 = vunpack.c.l.b16 %v210
        %v650 = vunpack.c.l.b16 %v211
        %v651 = vunpack.c.l.b16 %v212
        %v652 = vunpack.c.l.b16 %v213
        %v653 = vpack.c.b16 %v646, %v645
        %v654 = vpack.c.b16 %v648, %v647
        %v655 = vpack.c.b16 %v650, %v649
        %v656 = vpack.c.b16 %v652, %v651
        %v661 = vunpack.c.l.b16 %v238
        %v662 = vunpack.c.l.b16 %v252
        %v663 = vunpack.c.l.b16 %v266
        %v664 = vunpack.c.l.b16 %v280
        %v665 = vunpack.c.l.b16 %v294
        %v666 = vunpack.c.l.b16 %v308
        %v667 = vunpack.c.l.b16 %v322
        %v668 = vunpack.c.l.b16 %v336
        %v669 = vpack.c.b16 %v662, %v661
        %v670 = vpack.c.b16 %v664, %v663
        %v671 = vpack.c.b16 %v666, %v665
        %v672 = vpack.c.b16 %v668, %v667
        %v685 = vunpack.c.l.b16 %v338
        %v686 = vunpack.c.l.b16 %v339
        %v687 = vunpack.c.l.b16 %v340
        %v688 = vunpack.c.l.b16 %v341
        %v689 = vunpack.c.l.b16 %v342
        %v690 = vunpack.c.l.b16 %v343
        %v691 = vunpack.c.l.b16 %v344
        %v692 = vunpack.c.l.b16 %v345
        %v693 = vpack.c.b16 %v686, %v685
        %v694 = vpack.c.b16 %v688, %v687
        %v695 = vpack.c.b16 %v690, %v689
        %v696 = vpack.c.b16 %v692, %v691
        %v709 = vunpack.c.l.b16 %v347
        %v710 = vunpack.c.l.b16 %v348
        %v711 = vunpack.c.l.b16 %v349
        %v712 = vunpack.c.l.b16 %v350
        %v713 = vunpack.c.l.b16 %v351
        %v714 = vunpack.c.l.b16 %v352
        %v715 = vunpack.c.l.b16 %v353
        %v716 = vunpack.c.l.b16 %v354
        %v717 = vpack.c.b16 %v710, %v709
        %v718 = vpack.c.b16 %v712, %v711
        %v719 = vpack.c.b16 %v714, %v713
        %v720 = vpack.c.b16 %v716, %v715
        %v725 = vunpack.c.l.b16 %v376
        %v726 = vunpack.c.l.b16 %v390
        %v727 = vunpack.c.l.b16 %v404
        %v728 = vunpack.c.l.b16 %v418
        %v729 = vunpack.c.l.b16 %v432
        %v730 = vunpack.c.l.b16 %v446
        %v731 = vunpack.c.l.b16 %v460
        %v732 = vunpack.c.l.b16 %v474
        %v733 = vpack.c.b16 %v726, %v725
        %v734 = vpack.c.b16 %v728, %v727
        %v735 = vpack.c.b16 %v730, %v729
        %v736 = vpack.c.b16 %v732, %v731
        %v749 = vunpack.c.l.b16 %v476
        %v750 = vunpack.c.l.b16 %v477
        %v751 = vunpack.c.l.b16 %v478
        %v752 = vunpack.c.l.b16 %v479
        %v753 = vunpack.c.l.b16 %v480
        %v754 = vunpack.c.l.b16 %v481
        %v755 = vunpack.c.l.b16 %v482
        %v756 = vunpack.c.l.b16 %v483
        %v757 = vpack.c.b16 %v750, %v749
        %v758 = vpack.c.b16 %v752, %v751
        %v759 = vpack.c.b16 %v754, %v753
        %v760 = vpack.c.b16 %v756, %v755
        %v773 = vunpack.c.l.b16 %v485
        %v774 = vunpack.c.l.b16 %v486
        %v775 = vunpack.c.l.b16 %v487
        %v776 = vunpack.c.l.b16 %v488
        %v777 = vunpack.c.l.b16 %v489
        %v778 = vunpack.c.l.b16 %v490
        %v779 = vunpack.c.l.b16 %v491
        %v780 = vunpack.c.l.b16 %v492
        %v781 = vpack.c.b16 %v774, %v773
        %v782 = vpack.c.b16 %v776, %v775
        %v783 = vpack.c.b16 %v778, %v777
        %v784 = vpack.c.b16 %v780, %v779
        %v789 = vunpack.c.l.b16 %v514
        %v790 = vunpack.c.l.b16 %v528
        %v791 = vunpack.c.l.b16 %v542
        %v792 = vunpack.c.l.b16 %v556
        %v793 = vunpack.c.l.b16 %v570
        %v794 = vunpack.c.l.b16 %v584
        %v795 = vunpack.c.l.b16 %v598
        %v796 = vunpack.c.l.b16 %v612
        %v797 = vpack.c.b16 %v790, %v789
        %v798 = vpack.c.b16 %v792, %v791
        %v799 = vpack.c.b16 %v794, %v793
        %v800 = vpack.c.b16 %v796, %v795
        %v805 = vld [vmem:[%s1] sm:$0xf]
        %v806 = vld [vmem:[%s1 + $0x4] sm:$0xf]
        %v807 = vld [vmem:[%s1 + $0x8] sm:$0xf]
        %v808 = vld [vmem:[%s1 + $0xc] sm:$0xf]
        %v809 = vld [vmem:[%s1 + $0x10] sm:$0xf]
        %v810 = vld [vmem:[%s1 + $0x14] sm:$0xf]
        %v811 = vld [vmem:[%s1 + $0x18] sm:$0xf]
        %v812 = vld [vmem:[%s1 + $0x1c] sm:$0xf]
        %v813 = vld [vmem:[%s1 + $0x20] sm:$0xf]
        %v814 = vld [vmem:[%s1 + $0x24] sm:$0xf]
        %v815 = vld [vmem:[%s1 + $0x28] sm:$0xf]
        %v816 = vld [vmem:[%s1 + $0x2c] sm:$0xf]
        %v817 = vld [vmem:[%s1 + $0x30] sm:$0xf]
        %v818 = vld [vmem:[%s1 + $0x34] sm:$0xf]
        %v819 = vld [vmem:[%s1 + $0x38] sm:$0xf]
        %v820 = vld [vmem:[%s1 + $0x3c] sm:$0xf]
        %v821 = vld [vmem:[%s1 + $0x40] sm:$0xf]
        %v822 = vld [vmem:[%s1 + $0x44] sm:$0xf]
        %v823 = vld [vmem:[%s1 + $0x48] sm:$0xf]
        %v824 = vld [vmem:[%s1 + $0x4c] sm:$0xf]
        %v825 = vld [vmem:[%s1 + $0x50] sm:$0xf]
        %v826 = vld [vmem:[%s1 + $0x54] sm:$0xf]
        %v827 = vld [vmem:[%s1 + $0x58] sm:$0xf]
        %v828 = vld [vmem:[%s1 + $0x5c] sm:$0xf]
        %v829 = vld [vmem:[%s1 + $0x60] sm:$0xf]
        %v830 = vld [vmem:[%s1 + $0x64] sm:$0xf]
        %v831 = vld [vmem:[%s1 + $0x68] sm:$0xf]
        %v832 = vld [vmem:[%s1 + $0x6c] sm:$0xf]
        %v833 = vld [vmem:[%s1 + $0x70] sm:$0xf]
        %v834 = vld [vmem:[%s1 + $0x74] sm:$0xf]
        %v835 = vld [vmem:[%s1 + $0x78] sm:$0xf]
        %v836 = vld [vmem:[%s1 + $0x7c] sm:$0xf]
        %v837 = vld [vmem:[%s1 + $0x80] sm:$0xf]
        %v838 = vld [vmem:[%s1 + $0x84] sm:$0xf]
        %v839 = vld [vmem:[%s1 + $0x88] sm:$0xf]
        %v840 = vld [vmem:[%s1 + $0x8c] sm:$0xf]
        %v841 = vld [vmem:[%s1 + $0x90] sm:$0xf]
        %v842 = vld [vmem:[%s1 + $0x94] sm:$0xf]
        %v843 = vld [vmem:[%s1 + $0x98] sm:$0xf]
        %v844 = vld [vmem:[%s1 + $0x9c] sm:$0xf]
        %v845 = vld [vmem:[%s1 + $0xa0] sm:$0xf]
        %v846 = vld [vmem:[%s1 + $0xa4] sm:$0xf]
        %v847 = vld [vmem:[%s1 + $0xa8] sm:$0xf]
        %v848 = vld [vmem:[%s1 + $0xac] sm:$0xf]
        %v849 = vld [vmem:[%s1 + $0xb0] sm:$0xf]
        %v850 = vld [vmem:[%s1 + $0xb4] sm:$0xf]
        %v851 = vld [vmem:[%s1 + $0xb8] sm:$0xf]
        %v852 = vld [vmem:[%s1 + $0xbc] sm:$0xf]
        %v853 = vld [vmem:[%s1 + $0xc0] sm:$0xf]
        %v854 = vld [vmem:[%s1 + $0xc4] sm:$0xf]
        %v855 = vld [vmem:[%s1 + $0xc8] sm:$0xf]
        %v856 = vld [vmem:[%s1 + $0xcc] sm:$0xf]
        %v857 = vld [vmem:[%s1 + $0xd0] sm:$0xf]
        %v858 = vld [vmem:[%s1 + $0xd4] sm:$0xf]
        %v859 = vld [vmem:[%s1 + $0xd8] sm:$0xf]
        %v860 = vld [vmem:[%s1 + $0xdc] sm:$0xf]
        %v861 = vld [vmem:[%s1 + $0xe0] sm:$0xf]
        %v862 = vld [vmem:[%s1 + $0xe4] sm:$0xf]
        %v863 = vld [vmem:[%s1 + $0xe8] sm:$0xf]
        %v864 = vld [vmem:[%s1 + $0xec] sm:$0xf]
        %v865 = vld [vmem:[%s1 + $0xf0] sm:$0xf]
        %v866 = vld [vmem:[%s1 + $0xf4] sm:$0xf]
        %v867 = vld [vmem:[%s1 + $0xf8] sm:$0xf]
        %v868 = vld [vmem:[%s1 + $0xfc] sm:$0xf]
        %v869 = vld [vmem:[%s1 + $0x100] sm:$0xf]
        %v870 = vld [vmem:[%s1 + $0x104] sm:$0xf]
        %v871 = vld [vmem:[%s1 + $0x108] sm:$0xf]
        %v872 = vld [vmem:[%s1 + $0x10c] sm:$0xf]
        %v873 = vld [vmem:[%s1 + $0x110] sm:$0xf]
        %v874 = vld [vmem:[%s1 + $0x114] sm:$0xf]
        %v875 = vld [vmem:[%s1 + $0x118] sm:$0xf]
        %v876 = vld [vmem:[%s1 + $0x11c] sm:$0xf]
        %v877 = vld [vmem:[%s1 + $0x120] sm:$0xf]
        %v878 = vld [vmem:[%s1 + $0x124] sm:$0xf]
        %v879 = vld [vmem:[%s1 + $0x128] sm:$0xf]
        %v880 = vld [vmem:[%s1 + $0x12c] sm:$0xf]
        %v881 = vld [vmem:[%s1 + $0x130] sm:$0xf]
        %v882 = vld [vmem:[%s1 + $0x134] sm:$0xf]
        %v883 = vld [vmem:[%s1 + $0x138] sm:$0xf]
        %v884 = vld [vmem:[%s1 + $0x13c] sm:$0xf]
        %v885 = vld [vmem:[%s1 + $0x140] sm:$0xf]
        %v886 = vld [vmem:[%s1 + $0x144] sm:$0xf]
        %v887 = vld [vmem:[%s1 + $0x148] sm:$0xf]
        %v888 = vld [vmem:[%s1 + $0x14c] sm:$0xf]
        %v889 = vld [vmem:[%s1 + $0x150] sm:$0xf]
        %v890 = vld [vmem:[%s1 + $0x154] sm:$0xf]
        %v891 = vld [vmem:[%s1 + $0x158] sm:$0xf]
        %v892 = vld [vmem:[%s1 + $0x15c] sm:$0xf]
        %v893 = vld [vmem:[%s1 + $0x160] sm:$0xf]
        %v894 = vld [vmem:[%s1 + $0x164] sm:$0xf]
        %v895 = vld [vmem:[%s1 + $0x168] sm:$0xf]
        %v896 = vld [vmem:[%s1 + $0x16c] sm:$0xf]
        %v897 = vld [vmem:[%s1 + $0x170] sm:$0xf]
        %v898 = vld [vmem:[%s1 + $0x174] sm:$0xf]
        %v899 = vld [vmem:[%s1 + $0x178] sm:$0xf]
        %v900 = vld [vmem:[%s1 + $0x17c] sm:$0xf]
        %v901 = vld [vmem:[%s1 + $0x180] sm:$0xf]
        %v902 = vld [vmem:[%s1 + $0x184] sm:$0xf]
        %v903 = vld [vmem:[%s1 + $0x188] sm:$0xf]
        %v904 = vld [vmem:[%s1 + $0x18c] sm:$0xf]
        %v905 = vld [vmem:[%s1 + $0x190] sm:$0xf]
        %v906 = vld [vmem:[%s1 + $0x194] sm:$0xf]
        %v907 = vld [vmem:[%s1 + $0x198] sm:$0xf]
        %v908 = vld [vmem:[%s1 + $0x19c] sm:$0xf]
        %v909 = vld [vmem:[%s1 + $0x1a0] sm:$0xf]
        %v910 = vld [vmem:[%s1 + $0x1a4] sm:$0xf]
        %v911 = vld [vmem:[%s1 + $0x1a8] sm:$0xf]
        %v912 = vld [vmem:[%s1 + $0x1ac] sm:$0xf]
        %v913 = vld [vmem:[%s1 + $0x1b0] sm:$0xf]
        %v914 = vld [vmem:[%s1 + $0x1b4] sm:$0xf]
        %v915 = vld [vmem:[%s1 + $0x1b8] sm:$0xf]
        %v916 = vld [vmem:[%s1 + $0x1bc] sm:$0xf]
        %v917 = vld [vmem:[%s1 + $0x1c0] sm:$0xf]
        %v918 = vld [vmem:[%s1 + $0x1c4] sm:$0xf]
        %v919 = vld [vmem:[%s1 + $0x1c8] sm:$0xf]
        %v920 = vld [vmem:[%s1 + $0x1cc] sm:$0xf]
        %v921 = vld [vmem:[%s1 + $0x1d0] sm:$0xf]
        %v922 = vld [vmem:[%s1 + $0x1d4] sm:$0xf]
        %v923 = vld [vmem:[%s1 + $0x1d8] sm:$0xf]
        %v924 = vld [vmem:[%s1 + $0x1dc] sm:$0xf]
        %v925 = vld [vmem:[%s1 + $0x1e0] sm:$0xf]
        %v926 = vld [vmem:[%s1 + $0x1e4] sm:$0xf]
        %v927 = vld [vmem:[%s1 + $0x1e8] sm:$0xf]
        %v928 = vld [vmem:[%s1 + $0x1ec] sm:$0xf]
        %v929 = vld [vmem:[%s1 + $0x1f0] sm:$0xf]
        %v930 = vld [vmem:[%s1 + $0x1f4] sm:$0xf]
        %v931 = vld [vmem:[%s1 + $0x1f8] sm:$0xf]
        %v932 = vld [vmem:[%s1 + $0x1fc] sm:$0xf]
        %v933 = vld [vmem:[%s1 + $0x200] sm:$0xf]
        %v934 = vld [vmem:[%s1 + $0x204] sm:$0xf]
        %v935 = vld [vmem:[%s1 + $0x208] sm:$0xf]
        %v936 = vld [vmem:[%s1 + $0x20c] sm:$0xf]
        %v937 = vld [vmem:[%s1 + $0x210] sm:$0xf]
        %v938 = vld [vmem:[%s1 + $0x214] sm:$0xf]
        %v939 = vld [vmem:[%s1 + $0x218] sm:$0xf]
        %v940 = vld [vmem:[%s1 + $0x21c] sm:$0xf]
        %v941 = vld [vmem:[%s1 + $0x220] sm:$0xf]
        %v942 = vld [vmem:[%s1 + $0x224] sm:$0xf]
        %v943 = vld [vmem:[%s1 + $0x228] sm:$0xf]
        %v944 = vld [vmem:[%s1 + $0x22c] sm:$0xf]
        %v945 = vld [vmem:[%s1 + $0x230] sm:$0xf]
        %v946 = vld [vmem:[%s1 + $0x234] sm:$0xf]
        %v947 = vld [vmem:[%s1 + $0x238] sm:$0xf]
        %v948 = vld [vmem:[%s1 + $0x23c] sm:$0xf]
        %v1093 = vunpack.c.l.b16 %v805
        %v1094 = vunpack.c.l.b16 %v806
        %v1095 = vunpack.c.l.b16 %v807
        %v1096 = vunpack.c.l.b16 %v808
        %v1097 = vunpack.c.l.b16 %v809
        %v1098 = vunpack.c.l.b16 %v810
        %v1099 = vunpack.c.l.b16 %v811
        %v1100 = vunpack.c.l.b16 %v812
        %v1101 = vunpack.c.l.b16 %v813
        %v1102 = vunpack.c.l.b16 %v814
        %v1103 = vunpack.c.l.b16 %v815
        %v1104 = vunpack.c.l.b16 %v816
        %v1105 = vunpack.c.l.b16 %v817
        %v1106 = vunpack.c.l.b16 %v818
        %v1107 = vunpack.c.l.b16 %v819
        %v1108 = vunpack.c.l.b16 %v820
        %v1109 = vunpack.c.l.b16 %v821
        %v1110 = vunpack.c.l.b16 %v822
        %v1111 = vunpack.c.l.b16 %v823
        %v1112 = vunpack.c.l.b16 %v824
        %v1113 = vunpack.c.l.b16 %v825
        %v1114 = vunpack.c.l.b16 %v826
        %v1115 = vunpack.c.l.b16 %v827
        %v1116 = vunpack.c.l.b16 %v828
        %v1117 = vunpack.c.l.b16 %v829
        %v1118 = vunpack.c.l.b16 %v830
        %v1119 = vunpack.c.l.b16 %v831
        %v1120 = vunpack.c.l.b16 %v832
        %v1121 = vunpack.c.l.b16 %v833
        %v1122 = vunpack.c.l.b16 %v834
        %v1123 = vunpack.c.l.b16 %v835
        %v1124 = vunpack.c.l.b16 %v836
        %v1125 = vunpack.c.l.b16 %v837
        %v1126 = vunpack.c.l.b16 %v838
        %v1127 = vunpack.c.l.b16 %v839
        %v1128 = vunpack.c.l.b16 %v840
        %v1129 = vunpack.c.l.b16 %v841
        %v1130 = vunpack.c.l.b16 %v842
        %v1131 = vunpack.c.l.b16 %v843
        %v1132 = vunpack.c.l.b16 %v844
        %v1133 = vunpack.c.l.b16 %v845
        %v1134 = vunpack.c.l.b16 %v846
        %v1135 = vunpack.c.l.b16 %v847
        %v1136 = vunpack.c.l.b16 %v848
        %v1137 = vunpack.c.l.b16 %v849
        %v1138 = vunpack.c.l.b16 %v850
        %v1139 = vunpack.c.l.b16 %v851
        %v1140 = vunpack.c.l.b16 %v852
        %v1141 = vunpack.c.l.b16 %v853
        %v1142 = vunpack.c.l.b16 %v854
        %v1143 = vunpack.c.l.b16 %v855
        %v1144 = vunpack.c.l.b16 %v856
        %v1145 = vunpack.c.l.b16 %v857
        %v1146 = vunpack.c.l.b16 %v858
        %v1147 = vunpack.c.l.b16 %v859
        %v1148 = vunpack.c.l.b16 %v860
        %v1149 = vunpack.c.l.b16 %v861
        %v1150 = vunpack.c.l.b16 %v862
        %v1151 = vunpack.c.l.b16 %v863
        %v1152 = vunpack.c.l.b16 %v864
        %v1153 = vunpack.c.l.b16 %v865
        %v1154 = vunpack.c.l.b16 %v866
        %v1155 = vunpack.c.l.b16 %v867
        %v1156 = vunpack.c.l.b16 %v868
        %v1157 = vunpack.c.l.b16 %v869
        %v1158 = vunpack.c.l.b16 %v870
        %v1159 = vunpack.c.l.b16 %v871
        %v1160 = vunpack.c.l.b16 %v872
        %v1161 = vunpack.c.l.b16 %v873
        %v1162 = vunpack.c.l.b16 %v874
        %v1163 = vunpack.c.l.b16 %v875
        %v1164 = vunpack.c.l.b16 %v876
        %v1165 = vunpack.c.l.b16 %v877
        %v1166 = vunpack.c.l.b16 %v878
        %v1167 = vunpack.c.l.b16 %v879
        %v1168 = vunpack.c.l.b16 %v880
        %v1169 = vunpack.c.l.b16 %v881
        %v1170 = vunpack.c.l.b16 %v882
        %v1171 = vunpack.c.l.b16 %v883
        %v1172 = vunpack.c.l.b16 %v884
        %v1173 = vunpack.c.l.b16 %v885
        %v1174 = vunpack.c.l.b16 %v886
        %v1175 = vunpack.c.l.b16 %v887
        %v1176 = vunpack.c.l.b16 %v888
        %v1177 = vunpack.c.l.b16 %v889
        %v1178 = vunpack.c.l.b16 %v890
        %v1179 = vunpack.c.l.b16 %v891
        %v1180 = vunpack.c.l.b16 %v892
        %v1181 = vunpack.c.l.b16 %v893
        %v1182 = vunpack.c.l.b16 %v894
        %v1183 = vunpack.c.l.b16 %v895
        %v1184 = vunpack.c.l.b16 %v896
        %v1185 = vunpack.c.l.b16 %v897
        %v1186 = vunpack.c.l.b16 %v898
        %v1187 = vunpack.c.l.b16 %v899
        %v1188 = vunpack.c.l.b16 %v900
        %v1189 = vunpack.c.l.b16 %v901
        %v1190 = vunpack.c.l.b16 %v902
        %v1191 = vunpack.c.l.b16 %v903
        %v1192 = vunpack.c.l.b16 %v904
        %v1193 = vunpack.c.l.b16 %v905
        %v1194 = vunpack.c.l.b16 %v906
        %v1195 = vunpack.c.l.b16 %v907
        %v1196 = vunpack.c.l.b16 %v908
        %v1197 = vunpack.c.l.b16 %v909
        %v1198 = vunpack.c.l.b16 %v910
        %v1199 = vunpack.c.l.b16 %v911
        %v1200 = vunpack.c.l.b16 %v912
        %v1201 = vunpack.c.l.b16 %v913
        %v1202 = vunpack.c.l.b16 %v914
        %v1203 = vunpack.c.l.b16 %v915
        %v1204 = vunpack.c.l.b16 %v916
        %v1205 = vunpack.c.l.b16 %v917
        %v1206 = vunpack.c.l.b16 %v918
        %v1207 = vunpack.c.l.b16 %v919
        %v1208 = vunpack.c.l.b16 %v920
        %v1209 = vunpack.c.l.b16 %v921
        %v1210 = vunpack.c.l.b16 %v922
        %v1211 = vunpack.c.l.b16 %v923
        %v1212 = vunpack.c.l.b16 %v924
        %v1213 = vunpack.c.l.b16 %v925
        %v1214 = vunpack.c.l.b16 %v926
        %v1215 = vunpack.c.l.b16 %v927
        %v1216 = vunpack.c.l.b16 %v928
        %v1217 = vunpack.c.l.b16 %v929
        %v1218 = vunpack.c.l.b16 %v930
        %v1219 = vunpack.c.l.b16 %v931
        %v1220 = vunpack.c.l.b16 %v932
        %v1221 = vunpack.c.l.b16 %v933
        %v1222 = vunpack.c.l.b16 %v934
        %v1223 = vunpack.c.l.b16 %v935
        %v1224 = vunpack.c.l.b16 %v936
        %v1225 = vunpack.c.l.b16 %v937
        %v1226 = vunpack.c.l.b16 %v938
        %v1227 = vunpack.c.l.b16 %v939
        %v1228 = vunpack.c.l.b16 %v940
        %v1229 = vunpack.c.l.b16 %v941
        %v1230 = vunpack.c.l.b16 %v942
        %v1231 = vunpack.c.l.b16 %v943
        %v1232 = vunpack.c.l.b16 %v944
        %v1233 = vunpack.c.l.b16 %v945
        %v1234 = vunpack.c.l.b16 %v946
        %v1235 = vunpack.c.l.b16 %v947
        %v1236 = vunpack.c.l.b16 %v948
        %v1237 = vpack.c.b16 %v1094, %v1093
        %v1238 = vpack.c.b16 %v1096, %v1095
        %v1239 = vpack.c.b16 %v1098, %v1097
        %v1240 = vpack.c.b16 %v1100, %v1099
        %v1241 = vpack.c.b16 %v1102, %v1101
        %v1242 = vpack.c.b16 %v1104, %v1103
        %v1243 = vpack.c.b16 %v1106, %v1105
        %v1244 = vpack.c.b16 %v1108, %v1107
        %v1245 = vpack.c.b16 %v1110, %v1109
        %v1246 = vpack.c.b16 %v1112, %v1111
        %v1247 = vpack.c.b16 %v1114, %v1113
        %v1248 = vpack.c.b16 %v1116, %v1115
        %v1249 = vpack.c.b16 %v1118, %v1117
        %v1250 = vpack.c.b16 %v1120, %v1119
        %v1251 = vpack.c.b16 %v1122, %v1121
        %v1252 = vpack.c.b16 %v1124, %v1123
        %v1253 = vpack.c.b16 %v1126, %v1125
        %v1254 = vpack.c.b16 %v1128, %v1127
        %v1255 = vpack.c.b16 %v1130, %v1129
        %v1256 = vpack.c.b16 %v1132, %v1131
        %v1257 = vpack.c.b16 %v1134, %v1133
        %v1258 = vpack.c.b16 %v1136, %v1135
        %v1259 = vpack.c.b16 %v1138, %v1137
        %v1260 = vpack.c.b16 %v1140, %v1139
        %v1261 = vpack.c.b16 %v1142, %v1141
        %v1262 = vpack.c.b16 %v1144, %v1143
        %v1263 = vpack.c.b16 %v1146, %v1145
        %v1264 = vpack.c.b16 %v1148, %v1147
        %v1265 = vpack.c.b16 %v1150, %v1149
        %v1266 = vpack.c.b16 %v1152, %v1151
        %v1267 = vpack.c.b16 %v1154, %v1153
        %v1268 = vpack.c.b16 %v1156, %v1155
        %v1269 = vpack.c.b16 %v1158, %v1157
        %v1270 = vpack.c.b16 %v1160, %v1159
        %v1271 = vpack.c.b16 %v1162, %v1161
        %v1272 = vpack.c.b16 %v1164, %v1163
        %v1273 = vpack.c.b16 %v1166, %v1165
        %v1274 = vpack.c.b16 %v1168, %v1167
        %v1275 = vpack.c.b16 %v1170, %v1169
        %v1276 = vpack.c.b16 %v1172, %v1171
        %v1277 = vpack.c.b16 %v1174, %v1173
        %v1278 = vpack.c.b16 %v1176, %v1175
        %v1279 = vpack.c.b16 %v1178, %v1177
        %v1280 = vpack.c.b16 %v1180, %v1179
        %v1281 = vpack.c.b16 %v1182, %v1181
        %v1282 = vpack.c.b16 %v1184, %v1183
        %v1283 = vpack.c.b16 %v1186, %v1185
        %v1284 = vpack.c.b16 %v1188, %v1187
        %v1285 = vpack.c.b16 %v1190, %v1189
        %v1286 = vpack.c.b16 %v1192, %v1191
        %v1287 = vpack.c.b16 %v1194, %v1193
        %v1288 = vpack.c.b16 %v1196, %v1195
        %v1289 = vpack.c.b16 %v1198, %v1197
        %v1290 = vpack.c.b16 %v1200, %v1199
        %v1291 = vpack.c.b16 %v1202, %v1201
        %v1292 = vpack.c.b16 %v1204, %v1203
        %v1293 = vpack.c.b16 %v1206, %v1205
        %v1294 = vpack.c.b16 %v1208, %v1207
        %v1295 = vpack.c.b16 %v1210, %v1209
        %v1296 = vpack.c.b16 %v1212, %v1211
        %v1297 = vpack.c.b16 %v1214, %v1213
        %v1298 = vpack.c.b16 %v1216, %v1215
        %v1299 = vpack.c.b16 %v1218, %v1217
        %v1300 = vpack.c.b16 %v1220, %v1219
        %v1301 = vpack.c.b16 %v1222, %v1221
        %v1302 = vpack.c.b16 %v1224, %v1223
        %v1303 = vpack.c.b16 %v1226, %v1225
        %v1304 = vpack.c.b16 %v1228, %v1227
        %v1305 = vpack.c.b16 %v1230, %v1229
        %v1306 = vpack.c.b16 %v1232, %v1231
        %v1307 = vpack.c.b16 %v1234, %v1233
        %v1308 = vpack.c.b16 %v1236, %v1235
        %1381 = vmatprep.subr.bf16.mxu0 0
        %1382 = vmatpush1.bf16.msra.mxu0 %v1244
        %1383 = vmatprep.subr.bf16.mxu0 0
        %1384 = vmatpush1.bf16.msra.mxu0 %v1243
        %1385 = vmatprep.subr.bf16.mxu0 0
        %1386 = vmatpush1.bf16.msra.mxu0 %v1242
        %1387 = vmatprep.subr.bf16.mxu0 0
        %1388 = vmatpush1.bf16.msra.mxu0 %v1241
        %1389 = vmatprep.subr.bf16.mxu0 0
        %1390 = vmatpush1.bf16.msra.mxu0 %v1240
        %1391 = vmatprep.subr.bf16.mxu0 0
        %1392 = vmatpush1.bf16.msra.mxu0 %v1239
        %1393 = vmatprep.subr.bf16.mxu0 0
        %1394 = vmatpush1.bf16.msra.mxu0 %v1238
        %1395 = vmatprep.subr.bf16.mxu0 0
        %1396 = vmatpush1.bf16.msra.mxu0 %v1237
        %1397 = vmatprep.subr.bf16.mxu0 0
        %1398 = vmatpush2.bf16.msra.mxu0 %v1252
        %1399 = vmatprep.subr.bf16.mxu0 0
        %1400 = vmatpush2.bf16.msra.mxu0 %v1251
        %1401 = vmatprep.subr.bf16.mxu0 0
        %1402 = vmatpush2.bf16.msra.mxu0 %v1250
        %1403 = vmatprep.subr.bf16.mxu0 0
        %1404 = vmatpush2.bf16.msra.mxu0 %v1249
        %1405 = vmatprep.subr.bf16.mxu0 0
        %1406 = vmatpush2.bf16.msra.mxu0 %v1248
        %1407 = vmatprep.subr.bf16.mxu0 0
        %1408 = vmatpush2.bf16.msra.mxu0 %v1247
        %1409 = vmatprep.subr.bf16.mxu0 0
        %1410 = vmatpush2.bf16.msra.mxu0 %v1246
        %1411 = vmatprep.subr.bf16.mxu0 0
        %1412 = vmatpush2.bf16.msra.mxu0 %v1245
        %1413 = vmatprep.mubr.bf16.mxu0 %v653
        %1414 = vmatmul.mubr.bf16.gmra.mxu0 %v629
        %v1415 = vpop.f32.mrf.mxu0
        %v1416 = vadd.f32 0.0, %v1415
        %v1417 = vpop.f32.mrf.mxu0
        %v1418 = vpop.f32.mrf.mxu0
        %v1419 = vadd.f32 0.0, %v1418
        %v1420 = vpop.f32.mrf.mxu0
        %1421 = vmatprep.mubr.bf16.mxu0 %v654
        %1422 = vmatmul.mubr.bf16.gmra.mxu0 %v630
        %v1423 = vpop.f32.mrf.mxu0
        %v1424 = vadd.f32 0.0, %v1423
        %v1425 = vpop.f32.mrf.mxu0
        %v1426 = vpop.f32.mrf.mxu0
        %v1427 = vadd.f32 0.0, %v1426
        %v1428 = vpop.f32.mrf.mxu0
        %1429 = vmatprep.mubr.bf16.mxu0 %v655
        %1430 = vmatmul.mubr.bf16.gmra.mxu0 %v631
        %v1431 = vpop.f32.mrf.mxu0
        %v1432 = vadd.f32 0.0, %v1431
        %v1433 = vpop.f32.mrf.mxu0
        %v1434 = vpop.f32.mrf.mxu0
        %v1435 = vadd.f32 0.0, %v1434
        %v1436 = vpop.f32.mrf.mxu0
        %1437 = vmatprep.mubr.bf16.mxu0 %v656
        %1438 = vmatmul.mubr.bf16.gmra.mxu0 %v632
        %v1439 = vpop.f32.mrf.mxu0
        %v1440 = vadd.f32 0.0, %v1439
        %v1441 = vpop.f32.mrf.mxu0
        %v1442 = vpop.f32.mrf.mxu0
        %v1443 = vadd.f32 0.0, %v1442
        %v1444 = vpop.f32.mrf.mxu0
        %1445 = vdwg.mxu0
        %1446 = vmatprep.subr.bf16.mxu0 0
        %1447 = vmatpush1.bf16.msra.mxu0 %v1260
        %1448 = vmatprep.subr.bf16.mxu0 0
        %1449 = vmatpush1.bf16.msra.mxu0 %v1259
        %1450 = vmatprep.subr.bf16.mxu0 0
        %1451 = vmatpush1.bf16.msra.mxu0 %v1258
        %1452 = vmatprep.subr.bf16.mxu0 0
        %1453 = vmatpush1.bf16.msra.mxu0 %v1257
        %1454 = vmatprep.subr.bf16.mxu0 0
        %1455 = vmatpush1.bf16.msra.mxu0 %v1256
        %1456 = vmatprep.subr.bf16.mxu0 0
        %1457 = vmatpush1.bf16.msra.mxu0 %v1255
        %1458 = vmatprep.subr.bf16.mxu0 0
        %1459 = vmatpush1.bf16.msra.mxu0 %v1254
        %1460 = vmatprep.subr.bf16.mxu0 0
        %1461 = vmatpush1.bf16.msra.mxu0 %v1253
        %1462 = vmatprep.subr.bf16.mxu0 0
        %1463 = vmatpush2.bf16.msra.mxu0 %v1268
        %1464 = vmatprep.subr.bf16.mxu0 0
        %1465 = vmatpush2.bf16.msra.mxu0 %v1267
        %1466 = vmatprep.subr.bf16.mxu0 0
        %1467 = vmatpush2.bf16.msra.mxu0 %v1266
        %1468 = vmatprep.subr.bf16.mxu0 0
        %1469 = vmatpush2.bf16.msra.mxu0 %v1265
        %1470 = vmatprep.subr.bf16.mxu0 0
        %1471 = vmatpush2.bf16.msra.mxu0 %v1264
        %1472 = vmatprep.subr.bf16.mxu0 0
        %1473 = vmatpush2.bf16.msra.mxu0 %v1263
        %1474 = vmatprep.subr.bf16.mxu0 0
        %1475 = vmatpush2.bf16.msra.mxu0 %v1262
        %1476 = vmatprep.subr.bf16.mxu0 0
        %1477 = vmatpush2.bf16.msra.mxu0 %v1261
        %1478 = vmatprep.mubr.bf16.mxu0 %v693
        %1479 = vmatmul.mubr.bf16.gmra.mxu0 %v669
        %v1480 = vpop.f32.mrf.mxu0
        %v1481 = vadd.f32 %v1416, %v1480
        %v1482 = vpop.f32.mrf.mxu0
        %v1483 = vpop.f32.mrf.mxu0
        %v1484 = vadd.f32 %v1419, %v1483
        %v1485 = vpop.f32.mrf.mxu0
        %1486 = vmatprep.mubr.bf16.mxu0 %v694
        %1487 = vmatmul.mubr.bf16.gmra.mxu0 %v670
        %v1488 = vpop.f32.mrf.mxu0
        %v1489 = vadd.f32 %v1424, %v1488
        %v1490 = vpop.f32.mrf.mxu0
        %v1491 = vpop.f32.mrf.mxu0
        %v1492 = vadd.f32 %v1427, %v1491
        %v1493 = vpop.f32.mrf.mxu0
        %1494 = vmatprep.mubr.bf16.mxu0 %v695
        %1495 = vmatmul.mubr.bf16.gmra.mxu0 %v671
        %v1496 = vpop.f32.mrf.mxu0
        %v1497 = vadd.f32 %v1432, %v1496
        %v1498 = vpop.f32.mrf.mxu0
        %v1499 = vpop.f32.mrf.mxu0
        %v1500 = vadd.f32 %v1435, %v1499
        %v1501 = vpop.f32.mrf.mxu0
        %1502 = vmatprep.mubr.bf16.mxu0 %v696
        %1503 = vmatmul.mubr.bf16.gmra.mxu0 %v672
        %v1504 = vpop.f32.mrf.mxu0
        %v1505 = vadd.f32 %v1440, %v1504
        %v1506 = vpop.f32.mrf.mxu0
        %v1507 = vpop.f32.mrf.mxu0
        %v1508 = vadd.f32 %v1443, %v1507
        %v1509 = vpop.f32.mrf.mxu0
        %1510 = vdwg.mxu0
        %1511 = vmatprep.subr.bf16.mxu0 0
        %1512 = vmatpush1.bf16.msra.mxu0 %v1276
        %1513 = vmatprep.subr.bf16.mxu0 0
        %1514 = vmatpush1.bf16.msra.mxu0 %v1275
        %1515 = vmatprep.subr.bf16.mxu0 0
        %1516 = vmatpush1.bf16.msra.mxu0 %v1274
        %1517 = vmatprep.subr.bf16.mxu0 0
        %1518 = vmatpush1.bf16.msra.mxu0 %v1273
        %1519 = vmatprep.subr.bf16.mxu0 0
        %1520 = vmatpush1.bf16.msra.mxu0 %v1272
        %1521 = vmatprep.subr.bf16.mxu0 0
        %1522 = vmatpush1.bf16.msra.mxu0 %v1271
        %1523 = vmatprep.subr.bf16.mxu0 0
        %1524 = vmatpush1.bf16.msra.mxu0 %v1270
        %1525 = vmatprep.subr.bf16.mxu0 0
        %1526 = vmatpush1.bf16.msra.mxu0 %v1269
        %1527 = vmatprep.subr.bf16.mxu0 0
        %1528 = vmatpush2.bf16.msra.mxu0 %v1284
        %1529 = vmatprep.subr.bf16.mxu0 0
        %1530 = vmatpush2.bf16.msra.mxu0 %v1283
        %1531 = vmatprep.subr.bf16.mxu0 0
        %1532 = vmatpush2.bf16.msra.mxu0 %v1282
        %1533 = vmatprep.subr.bf16.mxu0 0
        %1534 = vmatpush2.bf16.msra.mxu0 %v1281
        %1535 = vmatprep.subr.bf16.mxu0 0
        %1536 = vmatpush2.bf16.msra.mxu0 %v1280
        %1537 = vmatprep.subr.bf16.mxu0 0
        %1538 = vmatpush2.bf16.msra.mxu0 %v1279
        %1539 = vmatprep.subr.bf16.mxu0 0
        %1540 = vmatpush2.bf16.msra.mxu0 %v1278
        %1541 = vmatprep.subr.bf16.mxu0 0
        %1542 = vmatpush2.bf16.msra.mxu0 %v1277
        %1543 = vmatprep.mubr.bf16.mxu0 %v733
        %1544 = vmatmul.mubr.bf16.gmra.mxu0 %v717
        %v1545 = vpop.f32.mrf.mxu0
        %v1546 = vadd.f32 %v1481, %v1545
        %v1547 = vpop.f32.mrf.mxu0
        %v1548 = vpop.f32.mrf.mxu0
        %v1549 = vadd.f32 %v1484, %v1548
        %v1550 = vpop.f32.mrf.mxu0
        %1551 = vmatprep.mubr.bf16.mxu0 %v734
        %1552 = vmatmul.mubr.bf16.gmra.mxu0 %v718
        %v1553 = vpop.f32.mrf.mxu0
        %v1554 = vadd.f32 %v1489, %v1553
        %v1555 = vpop.f32.mrf.mxu0
        %v1556 = vpop.f32.mrf.mxu0
        %v1557 = vadd.f32 %v1492, %v1556
        %v1558 = vpop.f32.mrf.mxu0
        %1559 = vmatprep.mubr.bf16.mxu0 %v735
        %1560 = vmatmul.mubr.bf16.gmra.mxu0 %v719
        %v1561 = vpop.f32.mrf.mxu0
        %v1562 = vadd.f32 %v1497, %v1561
        %v1563 = vpop.f32.mrf.mxu0
        %v1564 = vpop.f32.mrf.mxu0
        %v1565 = vadd.f32 %v1500, %v1564
        %v1566 = vpop.f32.mrf.mxu0
        %1567 = vmatprep.mubr.bf16.mxu0 %v736
        %1568 = vmatmul.mubr.bf16.gmra.mxu0 %v720
        %v1569 = vpop.f32.mrf.mxu0
        %v1570 = vadd.f32 %v1505, %v1569
        %v1571 = vpop.f32.mrf.mxu0
        %v1572 = vpop.f32.mrf.mxu0
        %v1573 = vadd.f32 %v1508, %v1572
        %v1574 = vpop.f32.mrf.mxu0
        %1575 = vdwg.mxu0
        %1576 = vmatprep.subr.bf16.mxu0 0
        %1577 = vmatpush1.bf16.msra.mxu0 %v1292
        %1578 = vmatprep.subr.bf16.mxu0 0
        %1579 = vmatpush1.bf16.msra.mxu0 %v1291
        %1580 = vmatprep.subr.bf16.mxu0 0
        %1581 = vmatpush1.bf16.msra.mxu0 %v1290
        %1582 = vmatprep.subr.bf16.mxu0 0
        %1583 = vmatpush1.bf16.msra.mxu0 %v1289
        %1584 = vmatprep.subr.bf16.mxu0 0
        %1585 = vmatpush1.bf16.msra.mxu0 %v1288
        %1586 = vmatprep.subr.bf16.mxu0 0
        %1587 = vmatpush1.bf16.msra.mxu0 %v1287
        %1588 = vmatprep.subr.bf16.mxu0 0
        %1589 = vmatpush1.bf16.msra.mxu0 %v1286
        %1590 = vmatprep.subr.bf16.mxu0 0
        %1591 = vmatpush1.bf16.msra.mxu0 %v1285
        %1592 = vmatprep.subr.bf16.mxu0 0
        %1593 = vmatpush2.bf16.msra.mxu0 %v1300
        %1594 = vmatprep.subr.bf16.mxu0 0
        %1595 = vmatpush2.bf16.msra.mxu0 %v1299
        %1596 = vmatprep.subr.bf16.mxu0 0
        %1597 = vmatpush2.bf16.msra.mxu0 %v1298
        %1598 = vmatprep.subr.bf16.mxu0 0
        %1599 = vmatpush2.bf16.msra.mxu0 %v1297
        %1600 = vmatprep.subr.bf16.mxu0 0
        %1601 = vmatpush2.bf16.msra.mxu0 %v1296
        %1602 = vmatprep.subr.bf16.mxu0 0
        %1603 = vmatpush2.bf16.msra.mxu0 %v1295
        %1604 = vmatprep.subr.bf16.mxu0 0
        %1605 = vmatpush2.bf16.msra.mxu0 %v1294
        %1606 = vmatprep.subr.bf16.mxu0 0
        %1607 = vmatpush2.bf16.msra.mxu0 %v1293
        %1608 = vmatprep.mubr.bf16.mxu0 %v781
        %1609 = vmatmul.mubr.bf16.gmra.mxu0 %v757
        %v1610 = vpop.f32.mrf.mxu0
        %v1611 = vadd.f32 %v1546, %v1610
        %v1612 = vpop.f32.mrf.mxu0
        %v1613 = vpop.f32.mrf.mxu0
        %v1614 = vadd.f32 %v1549, %v1613
        %v1615 = vpop.f32.mrf.mxu0
        %1616 = vmatprep.mubr.bf16.mxu0 %v782
        %1617 = vmatmul.mubr.bf16.gmra.mxu0 %v758
        %v1618 = vpop.f32.mrf.mxu0
        %v1619 = vadd.f32 %v1554, %v1618
        %v1620 = vpop.f32.mrf.mxu0
        %v1621 = vpop.f32.mrf.mxu0
        %v1622 = vadd.f32 %v1557, %v1621
        %v1623 = vpop.f32.mrf.mxu0
        %1624 = vmatprep.mubr.bf16.mxu0 %v783
        %1625 = vmatmul.mubr.bf16.gmra.mxu0 %v759
        %v1626 = vpop.f32.mrf.mxu0
        %v1627 = vadd.f32 %v1562, %v1626
        %v1628 = vpop.f32.mrf.mxu0
        %v1629 = vpop.f32.mrf.mxu0
        %v1630 = vadd.f32 %v1565, %v1629
        %v1631 = vpop.f32.mrf.mxu0
        %1632 = vmatprep.mubr.bf16.mxu0 %v784
        %1633 = vmatmul.mubr.bf16.gmra.mxu0 %v760
        %v1634 = vpop.f32.mrf.mxu0
        %v1635 = vadd.f32 %v1570, %v1634
        %v1636 = vpop.f32.mrf.mxu0
        %v1637 = vpop.f32.mrf.mxu0
        %v1638 = vadd.f32 %v1573, %v1637
        %v1639 = vpop.f32.mrf.mxu0
        %1640 = vdwg.mxu0
        %1641 = vmatprep.subr.bf16.mxu0 0
        %1642 = vmatpush1.bf16.msra.mxu0 %v1308
        %1643 = vmatprep.subr.bf16.mxu0 0
        %1644 = vmatpush1.bf16.msra.mxu0 %v1307
        %1645 = vmatprep.subr.bf16.mxu0 0
        %1646 = vmatpush1.bf16.msra.mxu0 %v1306
        %1647 = vmatprep.subr.bf16.mxu0 0
        %1648 = vmatpush1.bf16.msra.mxu0 %v1305
        %1649 = vmatprep.subr.bf16.mxu0 0
        %1650 = vmatpush1.bf16.msra.mxu0 %v1304
        %1651 = vmatprep.subr.bf16.mxu0 0
        %1652 = vmatpush1.bf16.msra.mxu0 %v1303
        %1653 = vmatprep.subr.bf16.mxu0 0
        %1654 = vmatpush1.bf16.msra.mxu0 %v1302
        %1655 = vmatprep.subr.bf16.mxu0 0
        %1656 = vmatpush1.bf16.msra.mxu0 %v1301
        %1657 = vmatprep.subr.bf16.mxu0 0
        %1658 = vmatpush2.bf16.msra.mxu0 0
        %1659 = vmatprep.subr.bf16.mxu0 0
        %1660 = vmatpush2.bf16.msra.mxu0 0
        %1661 = vmatprep.subr.bf16.mxu0 0
        %1662 = vmatpush2.bf16.msra.mxu0 0
        %1663 = vmatprep.subr.bf16.mxu0 0
        %1664 = vmatpush2.bf16.msra.mxu0 0
        %1665 = vmatprep.subr.bf16.mxu0 0
        %1666 = vmatpush2.bf16.msra.mxu0 0
        %1667 = vmatprep.subr.bf16.mxu0 0
        %1668 = vmatpush2.bf16.msra.mxu0 0
        %1669 = vmatprep.subr.bf16.mxu0 0
        %1670 = vmatpush2.bf16.msra.mxu0 0
        %1671 = vmatprep.subr.bf16.mxu0 0
        %1672 = vmatpush2.bf16.msra.mxu0 0
        %1673 = vmatprep.mubr.bf16.mxu0 0
        %1674 = vmatmul.mubr.bf16.gmra.mxu0 %v797
        %v1675 = vpop.f32.mrf.mxu0
        %v1676 = vadd.f32 %v1611, %v1675
        %v1677 = vpop.f32.mrf.mxu0
        %v1678 = vpop.f32.mrf.mxu0
        %v1679 = vadd.f32 %v1614, %v1678
        %v1680 = vpop.f32.mrf.mxu0
        %1681 = vmatprep.mubr.bf16.mxu0 0
        %1682 = vmatmul.mubr.bf16.gmra.mxu0 %v798
        %v1683 = vpop.f32.mrf.mxu0
        %v1684 = vadd.f32 %v1619, %v1683
        %v1685 = vpop.f32.mrf.mxu0
        %v1686 = vpop.f32.mrf.mxu0
        %v1687 = vadd.f32 %v1622, %v1686
        %v1688 = vpop.f32.mrf.mxu0
        %1689 = vmatprep.mubr.bf16.mxu0 0
        %1690 = vmatmul.mubr.bf16.gmra.mxu0 %v799
        %v1691 = vpop.f32.mrf.mxu0
        %v1692 = vadd.f32 %v1627, %v1691
        %v1693 = vpop.f32.mrf.mxu0
        %v1694 = vpop.f32.mrf.mxu0
        %v1695 = vadd.f32 %v1630, %v1694
        %v1696 = vpop.f32.mrf.mxu0
        %1697 = vmatprep.mubr.bf16.mxu0 0
        %1698 = vmatmul.mubr.bf16.gmra.mxu0 %v800
        %v1699 = vpop.f32.mrf.mxu0
        %v1700 = vadd.f32 %v1635, %v1699
        %v1701 = vpop.f32.mrf.mxu0
        %v1702 = vpop.f32.mrf.mxu0
        %v1703 = vadd.f32 %v1638, %v1702
        %v1704 = vpop.f32.mrf.mxu0
        %1705 = vdwg.mxu0
        %v1706 = vld [vmem:[%s2] sm:$0x1]
        %v1708 = vlaneseq
        %v1709 = vshrl.u32 %v1708, 7
        %v1710 = vsub.s32 0, %v1709
        %v1711 = vrot.slane %v1706, %v1710
        %v1713 = vmul.f32 %v1676, %v1711
        %v1714 = vmul.f32 %v1679, %v1711
        %v1715 = vmul.f32 %v1684, %v1711
        %v1716 = vmul.f32 %v1687, %v1711
        %v1717 = vmul.f32 %v1692, %v1711
        %v1718 = vmul.f32 %v1695, %v1711
        %v1719 = vmul.f32 %v1700, %v1711
        %v1720 = vmul.f32 %v1703, %v1711
        %v1721 = vld [vmem:[%s3] sm:$0x1]
        %v1723 = vlaneseq
        %v1724 = vshrl.u32 %v1723, 7
        %v1725 = vsub.s32 0, %v1724
        %v1726 = vrot.slane %v1721, %v1725
        %v1728 = vadd.f32 %v1713, %v1726
        %v1729 = vadd.f32 %v1714, %v1726
        %v1730 = vadd.f32 %v1715, %v1726
        %v1731 = vadd.f32 %v1716, %v1726
        %v1732 = vadd.f32 %v1717, %v1726
        %v1733 = vadd.f32 %v1718, %v1726
        %v1734 = vadd.f32 %v1719, %v1726
        %v1735 = vadd.f32 %v1720, %v1726
        %v1736 = vmax.f32 %v1728, 0.0
        %v1737 = vmax.f32 %v1729, 0.0
        %v1738 = vmax.f32 %v1730, 0.0
        %v1739 = vmax.f32 %v1731, 0.0
        %v1740 = vmax.f32 %v1732, 0.0
        %v1741 = vmax.f32 %v1733, 0.0
        %v1742 = vmax.f32 %v1734, 0.0
        %v1743 = vmax.f32 %v1735, 0.0
        %1744 = vst [vmem:[%s190] sm:$0xff] %v1736
        %1745 = vst [vmem:[%s190 + $0x8] sm:$0xff] %v1737
        %1746 = vst [vmem:[%s190 + $0x10] sm:$0xff] %v1738
        %1747 = vst [vmem:[%s190 + $0x18] sm:$0xff] %v1739
        %1748 = vst [vmem:[%s190 + $0x20] sm:$0xff] %v1740
        %1749 = vst [vmem:[%s190 + $0x28] sm:$0xff] %v1741
        %1750 = vst [vmem:[%s190 + $0x30] sm:$0xff] %v1742
        %1751 = vst [vmem:[%s190 + $0x38] sm:$0xff] %v1743
        %s1752 = sand.u32 %s115, 1
        %s1753 = scalar_lea.sflag [#allocation3], %s1752
        %s1754 = sand.u32 %s115, 1
        %s1755 = smul.addr %s1754, 64
        %s1756 = scalar_lea.vmem [#allocation2], %s1755
        // Predicated region
        $region37: #{tpu_custom_call.1} parent=35 // pred_check
          %p1757 = pneg %p125
        $region38: #{tpu_custom_call.1} parent=35 // pred_check_branch
          %1759 = sbr.rel (%p1757) target = $region40
        $region39: #{tpu_custom_call.1} parent=35 // pred_region
          %s1761 = ssub.s32 1024, 1024
          %1762 = vsyncadd %s1753, %s1761
          %s1763 = smul.addr %s18, 8
          %s1764 = smul.addr %s1763, 128
          %s1765 = scalar_lea.hbm %s4, %s1764
          %s1766 = sshll.u32 %s1756, 4
          %s1767 = int_to_ptr.vmem [resolvable:$true] %s1766
          %1772 = dma.vmem_to_hbm [thread:$0]  %s1767, 1024, %s1765, %s1753, 128, 128, 8
        $region40: #{tpu_custom_call.1} parent=35 // pred_fallthru
          _
      $region36: #{tpu_custom_call.1} parent=5 // pred_fallthru
        _
      %p1773 = scmp.le.s32.totalorder 2, %s13
      // Predicated region
      $region41: #{tpu_custom_call.1} parent=5 // pred_check
        %p1774 = pneg %p1773
      $region42: #{tpu_custom_call.1} parent=5 // pred_check_branch
        %1776 = sbr.rel (%p1774) target = $region44
      $region43: #{tpu_custom_call.1} parent=5 // pred_region
        %s1777 = ssub.s32 %s13, 2
        // Predicated region
        $region45: #{tpu_custom_call.1} parent=43 // pred_check
          %p1778 = pneg %p131
        $region46: #{tpu_custom_call.1} parent=43 // pred_check_branch
          %1780 = sbr.rel (%p1778) target = $region48
        $region47: #{tpu_custom_call.1} parent=43 // pred_region
          %s1781 = sand.u32 %s116, 1
          %s1782 = scalar_lea.sflag [#allocation3], %s1781
          %s1783 = sand.u32 %s116, 1
          %s1784 = smul.addr %s1783, 64
          %s1785 = scalar_lea.vmem [#allocation2], %s1784
          %1786 = dma.done %s1782, 1024
        $region48: #{tpu_custom_call.1} parent=43 // pred_fallthru
          _
      $region44: #{tpu_custom_call.1} parent=5 // pred_fallthru
        _
    $region6: #{tpu_custom_call.1} parent=1 // loop_footer
      %s17 = sadd.s32 1, %s13
    $region7: #{tpu_custom_call.1} parent=1 // loop_footer_branch
      %12 = sbr.rel target = $region3
    $region8: #{tpu_custom_call.1} parent=1 // loop_exit
      _
    %1787 = vsyncpa [#allocation3], 1
    %s1788 = scalar_lea.sflag [#allocation3], 1
    %1789 = vsyncpa %s1788, 1

</llo_original>
